<compile_context>
chip_gen: v6e
topology: v6e:2x2x1
jax: 0.10.0
libtpu: 0.0.40
codegen_flags: <defaults>
</compile_context>

<pallas_src>
import functools

import jax
import jax.numpy as jnp
from jax import lax
from jax.experimental import pallas as pl
from jax.experimental.pallas import tpu as pltpu


def _erf(x):
    # Numerical Recipes erfc rational approximation, |abs err| < 1.3e-7.
    # Built only from elementary ops (abs/exp/mul/add/where) so it always lowers.
    a = jnp.abs(x)
    t = 1.0 / (1.0 + 0.5 * a)
    poly = -1.26551223 + t * (1.00002368 + t * (0.37409196 + t * (0.09678418
           + t * (-0.18628806 + t * (0.27886807 + t * (-1.13520398
           + t * (1.48851587 + t * (-0.82215223 + t * 0.17087277))))))))
    erfc_a = t * jnp.exp(-a * a + poly)
    return jnp.where(x >= 0.0, 1.0 - erfc_a, erfc_a - 1.0)


def _gelu_exact(x):
    # Exact (erf-based) GELU, matching torch.nn.GELU() default.
    return 0.5 * x * (1.0 + _erf(x * 0.7071067811865476))


def encoder_layer_kernel(x_ref,
                         ln1_g_ref, ln1_b_ref,
                         wqkv_ref, bqkv_ref, wo_ref, bo_ref,
                         ln2_g_ref, ln2_b_ref,
                         w1_ref, b1_ref, w2_ref, b2_ref,
                         o_ref, *, num_heads, head_dim, eps):
    # Leading batch dim is squeezed by the BlockSpec: refs are (S, E).
    x = x_ref[...].astype(jnp.float32)                      # (S, E)
    S = x.shape[0]
    E = num_heads * head_dim

    # ---------------- LayerNorm 1 ----------------
    mu = jnp.mean(x, axis=-1, keepdims=True)
    xc = x - mu
    var = jnp.mean(xc * xc, axis=-1, keepdims=True)
    xn = xc * lax.rsqrt(var + eps)
    xn = xn * ln1_g_ref[...] + ln1_b_ref[...]

    # ---------------- fused QKV projection (single lane-dense MXU matmul) ----
    qkv = jnp.dot(xn, wqkv_ref[...],
                  preferred_element_type=jnp.float32) + bqkv_ref[...]   # (S, 3E)
    q = qkv[:, 0:E]
    k = qkv[:, E:2 * E]
    v = qkv[:, 2 * E:3 * E]

    # (S, E) -> (H, S, D): head-batched matmuls, no per-head slicing loop.
    qh = jnp.transpose(q.reshape(S, num_heads, head_dim), (1, 0, 2))
    kh = jnp.transpose(k.reshape(S, num_heads, head_dim), (1, 0, 2))
    vh = jnp.transpose(v.reshape(S, num_heads, head_dim), (1, 0, 2))

    # logits = (q @ k^T) / scale ; the 1/scale (= sqrt(D)) factor was folded
    # into Wq/bq by the wrapper, so no scaling of the (S,S) tiles here.
    # Contraction on the last dim of both operands: no explicit K transpose.
    logits = jnp.einsum('hqd,hkd->hqk', qh, kh,
                        preferred_element_type=jnp.float32)             # (H, S, S)

    # Softmax over keys (attention dropout = identity, eval mode).
    m = jnp.max(logits, axis=-1, keepdims=True)
    p = jnp.exp(logits - m)
    denom = jnp.sum(p, axis=-1, keepdims=True)
    attn = p * pl.reciprocal(denom, approx=True)

    ctx = jnp.einsum('hqk,hkd->hqd', attn, vh,
                     preferred_element_type=jnp.float32)                # (H, S, D)
    ctx = jnp.transpose(ctx, (1, 0, 2)).reshape(S, E)

    attn_out = jnp.dot(ctx, wo_ref[...],
                       preferred_element_type=jnp.float32) + bo_ref[...]

    # Residual 1 (dropout1 = identity).
    h = x + attn_out

    # ---------------- LayerNorm 2 ----------------
    mu2 = jnp.mean(h, axis=-1, keepdims=True)
    hc = h - mu2
    var2 = jnp.mean(hc * hc, axis=-1, keepdims=True)
    hn = hc * lax.rsqrt(var2 + eps)
    hn = hn * ln2_g_ref[...] + ln2_b_ref[...]

    # ---------------- MLP (dropout2/3 = identity) ----------------
    y = jnp.dot(hn, w1_ref[...], preferred_element_type=jnp.float32) + b1_ref[...]
    y = _gelu_exact(y)
    y = jnp.dot(y, w2_ref[...], preferred_element_type=jnp.float32) + b2_ref[...]

    # Residual 2.
    o_ref[...] = (h + y).astype(o_ref.dtype)


def encoder_layer(x, params, num_heads):
    """params = (ln1_g, ln1_b, wq, bq, wk, bk, wv, bv, wo, bo,
                 ln2_g, ln2_b, w1, b1, w2, b2); weights are [in, out]."""
    (ln1_g, ln1_b, wq, bq, wk, bk, wv, bv, wo, bo,
     ln2_g, ln2_b, w1, b1, w2, b2) = params

    B, S, E = x.shape
    assert E % num_heads == 0
    head_dim = E // num_heads
    dff = w1.shape[1]

    # Fold the PyTorch `logits / scale` (scale = 1/sqrt(head_dim) -> multiply by
    # sqrt(head_dim)) into the Q projection; fuse Q/K/V into one (E, 3E) matmul.
    inv_scale = jnp.float32(head_dim ** 0.5)
    wqkv = jnp.concatenate([wq * inv_scale, wk, wv], axis=1)          # (E, 3E)
    bqkv = jnp.concatenate([bq * inv_scale, bk, bv]).reshape(1, 3 * E)

    kernel = functools.partial(encoder_layer_kernel,
                               num_heads=num_heads, head_dim=head_dim, eps=1e-9)

    # Squeezed leading batch dim: kernel sees (S, E) refs directly.
    x_spec = pl.BlockSpec((None, S, E), lambda b: (b, 0, 0))

    def full(a):
        nd = a.ndim
        return pl.BlockSpec(tuple(a.shape), lambda b, _nd=nd: (0,) * _nd)

    args = (x,
            ln1_g.reshape(1, E), ln1_b.reshape(1, E),
            wqkv, bqkv, wo, bo.reshape(1, E),
            ln2_g.reshape(1, E), ln2_b.reshape(1, E),
            w1, b1.reshape(1, dff), w2, b2.reshape(1, E))

    in_specs = [x_spec] + [full(a) for a in args[1:]]

    return pl.pallas_call(
        kernel,
        out_shape=jax.ShapeDtypeStruct((B, S, E), x.dtype),
        grid=(B,),
        in_specs=in_specs,
        out_specs=x_spec,
        compiler_params=pltpu.CompilerParams(
            dimension_semantics=("parallel",),
            vmem_limit_bytes=32 * 1024 * 1024),
    )(*args)


def reference_encoder_layer(x, params, num_heads):
    """Plain-JAX reference matching the PyTorch EncoderLayer.forward exactly."""
    (ln1_g, ln1_b, wq, bq, wk, bk, wv, bv, wo, bo,
     ln2_g, ln2_b, w1, b1, w2, b2) = params
    B, S, E = x.shape
    D = E // num_heads
    scale = 1.0 / (D ** 0.5)
    eps = 1e-9

    def ln(z, g, b):
        mu = jnp.mean(z, axis=-1, keepdims=True)
        var = jnp.mean((z - mu) ** 2, axis=-1, keepdims=True)
        return (z - mu) / jnp.sqrt(var + eps) * g + b

    xn = ln(x, ln1_g, ln1_b)
    Q = xn @ wq + bq
    K = xn @ wk + bk
    V = xn @ wv + bv
    Q = Q.reshape(B, S, num_heads, D).transpose(0, 2, 1, 3)
    K = K.reshape(B, S, num_heads, D).transpose(0, 2, 1, 3)
    V = V.reshape(B, S, num_heads, D).transpose(0, 2, 1, 3)
    logits = jnp.einsum('bhqd,bhkd->bhqk', Q, K) / scale
    attn = jax.nn.softmax(logits, axis=-1)
    ctx = jnp.einsum('bhqk,bhkd->bhqd', attn, V)
    ctx = ctx.transpose(0, 2, 1, 3).reshape(B, S, E)
    attn_out = ctx @ wo + bo
    h = x + attn_out
    hn = ln(h, ln2_g, ln2_b)
    y = hn @ w1 + b1
    y = jax.nn.gelu(y, approximate=False)
    y = y @ w2 + b2
    return h + y


if __name__ == "__main__":
    B, S, E, H, DFF = 2, 8, 32, 4, 64
    key = jax.random.PRNGKey(0)
    ks = jax.random.split(key, 20)

    def w(k, shape):
        return jax.random.normal(k, shape, jnp.float32) * 0.05

    def vec(k, n):
        return jax.random.normal(k, (n,), jnp.float32) * 0.05

    params = (
        1.0 + vec(ks[0], E), vec(ks[1], E),       # layer_norm1 gamma / beta
        w(ks[2], (E, E)), vec(ks[3], E),          # q_linear   (W^T, b)
        w(ks[4], (E, E)), vec(ks[5], E),          # k_linear
        w(ks[6], (E, E)), vec(ks[7], E),          # v_linear
        w(ks[8], (E, E)), vec(ks[9], E),          # attn out linear
        1.0 + vec(ks[10], E), vec(ks[11], E),     # layer_norm2 gamma / beta
        w(ks[12], (E, DFF)), vec(ks[13], DFF),    # linear1
        w(ks[14], (DFF, E)), vec(ks[15], E),      # linear2
    )
    x = jax.random.normal(ks[16], (B, S, E), jnp.float32)

    out = encoder_layer(x, params, num_heads=H)
    out = jax.block_until_ready(out)

    ref = reference_encoder_layer(x, params, num_heads=H)
    assert out.shape == (B, S, E)
    max_err = jnp.max(jnp.abs(out - ref))
    assert jnp.allclose(out, ref, atol=2e-3, rtol=2e-3), f"max abs err {max_err}"

    print("KERNEL_OK")
</pallas_src>

<mosaic_0001>
module attributes {stable_mosaic.version = 11 : i64} {
  func.func @encoder_layer_kernel(%arg0: i32, %arg1: memref<1x8x32xf32, #tpu.memory_space<vmem>>, %arg2: memref<1x32xf32, #tpu.memory_space<vmem>>, %arg3: memref<1x32xf32, #tpu.memory_space<vmem>>, %arg4: memref<32x96xf32, #tpu.memory_space<vmem>>, %arg5: memref<1x96xf32, #tpu.memory_space<vmem>>, %arg6: memref<32x32xf32, #tpu.memory_space<vmem>>, %arg7: memref<1x32xf32, #tpu.memory_space<vmem>>, %arg8: memref<1x32xf32, #tpu.memory_space<vmem>>, %arg9: memref<1x32xf32, #tpu.memory_space<vmem>>, %arg10: memref<32x64xf32, #tpu.memory_space<vmem>>, %arg11: memref<1x64xf32, #tpu.memory_space<vmem>>, %arg12: memref<64x32xf32, #tpu.memory_space<vmem>>, %arg13: memref<1x32xf32, #tpu.memory_space<vmem>>, %arg14: memref<1x8x32xf32, #tpu.memory_space<vmem>>) attributes {dimension_semantics = [#tpu.dimension_semantics<parallel>], iteration_bounds = array<i64: 2>, scalar_prefetch = 0 : i64, scratch_operands = 0 : i64, tpu.core_type = #tpu.core_type<tc>, window_params = [{transform_indices = @transform_0, window_bounds = array<i64: 1, 8, 32>}, {pipeline_mode = #tpu.pipeline_mode<synchronous>, transform_indices = @transform_1, window_bounds = array<i64: 1, 32>}, {pipeline_mode = #tpu.pipeline_mode<synchronous>, transform_indices = @transform_2, window_bounds = array<i64: 1, 32>}, {pipeline_mode = #tpu.pipeline_mode<synchronous>, transform_indices = @transform_3, window_bounds = array<i64: 32, 96>}, {pipeline_mode = #tpu.pipeline_mode<synchronous>, transform_indices = @transform_4, window_bounds = array<i64: 1, 96>}, {pipeline_mode = #tpu.pipeline_mode<synchronous>, transform_indices = @transform_5, window_bounds = array<i64: 32, 32>}, {pipeline_mode = #tpu.pipeline_mode<synchronous>, transform_indices = @transform_6, window_bounds = array<i64: 1, 32>}, {pipeline_mode = #tpu.pipeline_mode<synchronous>, transform_indices = @transform_7, window_bounds = array<i64: 1, 32>}, {pipeline_mode = #tpu.pipeline_mode<synchronous>, transform_indices = @transform_8, window_bounds = array<i64: 1, 32>}, {pipeline_mode = #tpu.pipeline_mode<synchronous>, transform_indices = @transform_9, window_bounds = array<i64: 32, 64>}, {pipeline_mode = #tpu.pipeline_mode<synchronous>, transform_indices = @transform_10, window_bounds = array<i64: 1, 64>}, {pipeline_mode = #tpu.pipeline_mode<synchronous>, transform_indices = @transform_11, window_bounds = array<i64: 64, 32>}, {pipeline_mode = #tpu.pipeline_mode<synchronous>, transform_indices = @transform_12, window_bounds = array<i64: 1, 32>}, {transform_indices = @transform_13, window_bounds = array<i64: 1, 8, 32>}]} {
    %c0 = arith.constant 0 : index
    %c0_0 = arith.constant 0 : index
    %c0_1 = arith.constant 0 : index
    %0 = vector.load %arg1[%c0, %c0_0, %c0_1] : memref<1x8x32xf32, #tpu.memory_space<vmem>>, vector<1x8x32xf32>
    %1 = vector.shape_cast %0 : vector<1x8x32xf32> to vector<8x32xf32>
    %cst = arith.constant dense<0.000000e+00> : vector<8xf32>
    %2 = vector.multi_reduction <add>, %1, %cst [1] : vector<8x32xf32> to vector<8xf32>
    %3 = vector.shape_cast %2 : vector<8xf32> to vector<8x1xf32>
    %cst_2 = arith.constant 3.200000e+01 : f32
    %4 = vector.broadcast %cst_2 : f32 to vector<8x1xf32>
    %5 = arith.divf %3, %4 : vector<8x1xf32>
    %6 = vector.broadcast %5 : vector<8x1xf32> to vector<8x32xf32>
    %7 = arith.subf %1, %6 : vector<8x32xf32>
    %8 = arith.mulf %7, %7 : vector<8x32xf32>
    %cst_3 = arith.constant dense<0.000000e+00> : vector<8xf32>
    %9 = vector.multi_reduction <add>, %8, %cst_3 [1] : vector<8x32xf32> to vector<8xf32>
    %10 = vector.shape_cast %9 : vector<8xf32> to vector<8x1xf32>
    %cst_4 = arith.constant 3.200000e+01 : f32
    %11 = vector.broadcast %cst_4 : f32 to vector<8x1xf32>
    %12 = arith.divf %10, %11 : vector<8x1xf32>
    %cst_5 = arith.constant 9.99999971E-10 : f32
    %13 = vector.broadcast %cst_5 : f32 to vector<8x1xf32>
    %14 = arith.addf %12, %13 : vector<8x1xf32>
    %15 = math.rsqrt %14 : vector<8x1xf32>
    %16 = vector.broadcast %15 : vector<8x1xf32> to vector<8x32xf32>
    %17 = arith.mulf %7, %16 : vector<8x32xf32>
    %c0_6 = arith.constant 0 : index
    %c0_7 = arith.constant 0 : index
    %18 = vector.load %arg2[%c0_6, %c0_7] : memref<1x32xf32, #tpu.memory_space<vmem>>, vector<1x32xf32>
    %19 = vector.broadcast %18 : vector<1x32xf32> to vector<8x32xf32>
    %20 = arith.mulf %17, %19 : vector<8x32xf32>
    %c0_8 = arith.constant 0 : index
    %c0_9 = arith.constant 0 : index
    %21 = vector.load %arg3[%c0_8, %c0_9] : memref<1x32xf32, #tpu.memory_space<vmem>>, vector<1x32xf32>
    %22 = vector.broadcast %21 : vector<1x32xf32> to vector<8x32xf32>
    %23 = arith.addf %20, %22 : vector<8x32xf32>
    %c0_10 = arith.constant 0 : index
    %c0_11 = arith.constant 0 : index
    %24 = vector.load %arg4[%c0_10, %c0_11] : memref<32x96xf32, #tpu.memory_space<vmem>>, vector<32x96xf32>
    %cst_12 = arith.constant dense<0.000000e+00> : vector<8x96xf32>
    %25 = tpu.matmul %23, %24, %cst_12 {dimension_numbers = #tpu.dot_dimension_numbers<[1], [0], [0], [1], [0, 0, 1, 1], [], []>} : vector<8x32xf32>, vector<32x96xf32>, vector<8x96xf32> -> vector<8x96xf32>
    %c0_13 = arith.constant 0 : index
    %c0_14 = arith.constant 0 : index
    %26 = vector.load %arg5[%c0_13, %c0_14] : memref<1x96xf32, #tpu.memory_space<vmem>>, vector<1x96xf32>
    %27 = vector.broadcast %26 : vector<1x96xf32> to vector<8x96xf32>
    %28 = arith.addf %25, %27 : vector<8x96xf32>
    %29 = vector.extract_strided_slice %28 {offsets = [0, 0], sizes = [8, 32], strides = [1, 1]} : vector<8x96xf32> to vector<8x32xf32>
    %30 = vector.extract_strided_slice %28 {offsets = [0, 32], sizes = [8, 32], strides = [1, 1]} : vector<8x96xf32> to vector<8x32xf32>
    %31 = vector.extract_strided_slice %28 {offsets = [0, 64], sizes = [8, 32], strides = [1, 1]} : vector<8x96xf32> to vector<8x32xf32>
    %32 = vector.shape_cast %29 : vector<8x32xf32> to vector<8x4x8xf32>
    %33 = tpu.transpose %32, [1, 0, 2] : vector<8x4x8xf32> -> vector<4x8x8xf32>
    %34 = vector.shape_cast %30 : vector<8x32xf32> to vector<8x4x8xf32>
    %35 = tpu.transpose %34, [1, 0, 2] : vector<8x4x8xf32> -> vector<4x8x8xf32>
    %36 = vector.shape_cast %31 : vector<8x32xf32> to vector<8x4x8xf32>
    %37 = tpu.transpose %36, [1, 0, 2] : vector<8x4x8xf32> -> vector<4x8x8xf32>
    "tpu.trace_start"() <{level = 10 : i32, message = "hqd,hkd->hqk"}> : () -> ()
    %cst_15 = arith.constant dense<0.000000e+00> : vector<4x8x8xf32>
    %38 = tpu.matmul %33, %35, %cst_15 {dimension_numbers = #tpu.dot_dimension_numbers<[2], [2], [1], [1], [0, 0, 0, 1, 1, 1], [0], [0]>} : vector<4x8x8xf32>, vector<4x8x8xf32>, vector<4x8x8xf32> -> vector<4x8x8xf32>
    "tpu.trace_stop"() : () -> ()
    %cst_16 = arith.constant dense<0xFF800000> : vector<4x8xf32>
    %39 = vector.multi_reduction <maximumf>, %38, %cst_16 [2] : vector<4x8x8xf32> to vector<4x8xf32>
    %40 = vector.shape_cast %39 : vector<4x8xf32> to vector<4x8x1xf32>
    %41 = vector.broadcast %40 : vector<4x8x1xf32> to vector<4x8x8xf32>
    %42 = arith.subf %38, %41 : vector<4x8x8xf32>
    %43 = math.exp %42 : vector<4x8x8xf32>
    %cst_17 = arith.constant dense<0.000000e+00> : vector<4x8xf32>
    %44 = vector.multi_reduction <add>, %43, %cst_17 [2] : vector<4x8x8xf32> to vector<4x8xf32>
    %45 = vector.shape_cast %44 : vector<4x8xf32> to vector<4x8x1xf32>
    %46 = tpu.reciprocal %45 {approx = true} : vector<4x8x1xf32> -> vector<4x8x1xf32>
    %47 = vector.broadcast %46 : vector<4x8x1xf32> to vector<4x8x8xf32>
    %48 = arith.mulf %43, %47 : vector<4x8x8xf32>
    "tpu.trace_start"() <{level = 10 : i32, message = "hqk,hkd->hqd"}> : () -> ()
    %cst_18 = arith.constant dense<0.000000e+00> : vector<4x8x8xf32>
    %49 = tpu.matmul %48, %37, %cst_18 {dimension_numbers = #tpu.dot_dimension_numbers<[2], [1], [1], [2], [0, 0, 0, 1, 1, 2], [0], [0]>} : vector<4x8x8xf32>, vector<4x8x8xf32>, vector<4x8x8xf32> -> vector<4x8x8xf32>
    "tpu.trace_stop"() : () -> ()
    %50 = tpu.transpose %49, [1, 0, 2] : vector<4x8x8xf32> -> vector<8x4x8xf32>
    %51 = vector.shape_cast %50 : vector<8x4x8xf32> to vector<8x32xf32>
    %c0_19 = arith.constant 0 : index
    %c0_20 = arith.constant 0 : index
    %52 = vector.load %arg6[%c0_19, %c0_20] : memref<32x32xf32, #tpu.memory_space<vmem>>, vector<32x32xf32>
    %cst_21 = arith.constant dense<0.000000e+00> : vector<8x32xf32>
    %53 = tpu.matmul %51, %52, %cst_21 {dimension_numbers = #tpu.dot_dimension_numbers<[1], [0], [0], [1], [0, 0, 1, 1], [], []>} : vector<8x32xf32>, vector<32x32xf32>, vector<8x32xf32> -> vector<8x32xf32>
    %c0_22 = arith.constant 0 : index
    %c0_23 = arith.constant 0 : index
    %54 = vector.load %arg7[%c0_22, %c0_23] : memref<1x32xf32, #tpu.memory_space<vmem>>, vector<1x32xf32>
    %55 = vector.broadcast %54 : vector<1x32xf32> to vector<8x32xf32>
    %56 = arith.addf %53, %55 : vector<8x32xf32>
    %57 = arith.addf %1, %56 : vector<8x32xf32>
    %cst_24 = arith.constant dense<0.000000e+00> : vector<8xf32>
    %58 = vector.multi_reduction <add>, %57, %cst_24 [1] : vector<8x32xf32> to vector<8xf32>
    %59 = vector.shape_cast %58 : vector<8xf32> to vector<8x1xf32>
    %cst_25 = arith.constant 3.200000e+01 : f32
    %60 = vector.broadcast %cst_25 : f32 to vector<8x1xf32>
    %61 = arith.divf %59, %60 : vector<8x1xf32>
    %62 = vector.broadcast %61 : vector<8x1xf32> to vector<8x32xf32>
    %63 = arith.subf %57, %62 : vector<8x32xf32>
    %64 = arith.mulf %63, %63 : vector<8x32xf32>
    %cst_26 = arith.constant dense<0.000000e+00> : vector<8xf32>
    %65 = vector.multi_reduction <add>, %64, %cst_26 [1] : vector<8x32xf32> to vector<8xf32>
    %66 = vector.shape_cast %65 : vector<8xf32> to vector<8x1xf32>
    %cst_27 = arith.constant 3.200000e+01 : f32
    %67 = vector.broadcast %cst_27 : f32 to vector<8x1xf32>
    %68 = arith.divf %66, %67 : vector<8x1xf32>
    %cst_28 = arith.constant 9.99999971E-10 : f32
    %69 = vector.broadcast %cst_28 : f32 to vector<8x1xf32>
    %70 = arith.addf %68, %69 : vector<8x1xf32>
    %71 = math.rsqrt %70 : vector<8x1xf32>
    %72 = vector.broadcast %71 : vector<8x1xf32> to vector<8x32xf32>
    %73 = arith.mulf %63, %72 : vector<8x32xf32>
    %c0_29 = arith.constant 0 : index
    %c0_30 = arith.constant 0 : index
    %74 = vector.load %arg8[%c0_29, %c0_30] : memref<1x32xf32, #tpu.memory_space<vmem>>, vector<1x32xf32>
    %75 = vector.broadcast %74 : vector<1x32xf32> to vector<8x32xf32>
    %76 = arith.mulf %73, %75 : vector<8x32xf32>
    %c0_31 = arith.constant 0 : index
    %c0_32 = arith.constant 0 : index
    %77 = vector.load %arg9[%c0_31, %c0_32] : memref<1x32xf32, #tpu.memory_space<vmem>>, vector<1x32xf32>
    %78 = vector.broadcast %77 : vector<1x32xf32> to vector<8x32xf32>
    %79 = arith.addf %76, %78 : vector<8x32xf32>
    %c0_33 = arith.constant 0 : index
    %c0_34 = arith.constant 0 : index
    %80 = vector.load %arg10[%c0_33, %c0_34] : memref<32x64xf32, #tpu.memory_space<vmem>>, vector<32x64xf32>
    %cst_35 = arith.constant dense<0.000000e+00> : vector<8x64xf32>
    %81 = tpu.matmul %79, %80, %cst_35 {dimension_numbers = #tpu.dot_dimension_numbers<[1], [0], [0], [1], [0, 0, 1, 1], [], []>} : vector<8x32xf32>, vector<32x64xf32>, vector<8x64xf32> -> vector<8x64xf32>
    %c0_36 = arith.constant 0 : index
    %c0_37 = arith.constant 0 : index
    %82 = vector.load %arg11[%c0_36, %c0_37] : memref<1x64xf32, #tpu.memory_space<vmem>>, vector<1x64xf32>
    %83 = vector.broadcast %82 : vector<1x64xf32> to vector<8x64xf32>
    %84 = arith.addf %81, %83 : vector<8x64xf32>
    %cst_38 = arith.constant 5.000000e-01 : f32
    %85 = vector.broadcast %cst_38 : f32 to vector<8x64xf32>
    %86 = arith.mulf %85, %84 : vector<8x64xf32>
    %cst_39 = arith.constant 0.707106769 : f32
    %87 = vector.broadcast %cst_39 : f32 to vector<8x64xf32>
    %88 = arith.mulf %84, %87 : vector<8x64xf32>
    %89 = math.absf %88 : vector<8x64xf32>
    %cst_40 = arith.constant 5.000000e-01 : f32
    %90 = vector.broadcast %cst_40 : f32 to vector<8x64xf32>
    %91 = arith.mulf %90, %89 : vector<8x64xf32>
    %cst_41 = arith.constant 1.000000e+00 : f32
    %92 = vector.broadcast %cst_41 : f32 to vector<8x64xf32>
    %93 = arith.addf %92, %91 : vector<8x64xf32>
    %cst_42 = arith.constant 1.000000e+00 : f32
    %94 = vector.broadcast %cst_42 : f32 to vector<8x64xf32>
    %95 = arith.divf %94, %93 : vector<8x64xf32>
    %cst_43 = arith.constant 0.170872763 : f32
    %96 = vector.broadcast %cst_43 : f32 to vector<8x64xf32>
    %97 = arith.mulf %95, %96 : vector<8x64xf32>
    %cst_44 = arith.constant -0.822152256 : f32
    %98 = vector.broadcast %cst_44 : f32 to vector<8x64xf32>
    %99 = arith.addf %98, %97 : vector<8x64xf32>
    %100 = arith.mulf %95, %99 : vector<8x64xf32>
    %cst_45 = arith.constant 1.48851585 : f32
    %101 = vector.broadcast %cst_45 : f32 to vector<8x64xf32>
    %102 = arith.addf %101, %100 : vector<8x64xf32>
    %103 = arith.mulf %95, %102 : vector<8x64xf32>
    %cst_46 = arith.constant -1.13520396 : f32
    %104 = vector.broadcast %cst_46 : f32 to vector<8x64xf32>
    %105 = arith.addf %104, %103 : vector<8x64xf32>
    %106 = arith.mulf %95, %105 : vector<8x64xf32>
    %cst_47 = arith.constant 0.278868079 : f32
    %107 = vector.broadcast %cst_47 : f32 to vector<8x64xf32>
    %108 = arith.addf %107, %106 : vector<8x64xf32>
    %109 = arith.mulf %95, %108 : vector<8x64xf32>
    %cst_48 = arith.constant -0.186288059 : f32
    %110 = vector.broadcast %cst_48 : f32 to vector<8x64xf32>
    %111 = arith.addf %110, %109 : vector<8x64xf32>
    %112 = arith.mulf %95, %111 : vector<8x64xf32>
    %cst_49 = arith.constant 0.0967841818 : f32
    %113 = vector.broadcast %cst_49 : f32 to vector<8x64xf32>
    %114 = arith.addf %113, %112 : vector<8x64xf32>
    %115 = arith.mulf %95, %114 : vector<8x64xf32>
    %cst_50 = arith.constant 0.374091953 : f32
    %116 = vector.broadcast %cst_50 : f32 to vector<8x64xf32>
    %117 = arith.addf %116, %115 : vector<8x64xf32>
    %118 = arith.mulf %95, %117 : vector<8x64xf32>
    %cst_51 = arith.constant 1.00002372 : f32
    %119 = vector.broadcast %cst_51 : f32 to vector<8x64xf32>
    %120 = arith.addf %119, %118 : vector<8x64xf32>
    %121 = arith.mulf %95, %120 : vector<8x64xf32>
    %cst_52 = arith.constant -1.26551223 : f32
    %122 = vector.broadcast %cst_52 : f32 to vector<8x64xf32>
    %123 = arith.addf %122, %121 : vector<8x64xf32>
    %cst_53 = arith.constant 0.000000e+00 : f32
    %124 = vector.broadcast %cst_53 : f32 to vector<8x64xf32>
    %125 = arith.subf %124, %89 : vector<8x64xf32>
    %126 = arith.mulf %125, %89 : vector<8x64xf32>
    %127 = arith.addf %126, %123 : vector<8x64xf32>
    %128 = math.exp %127 : vector<8x64xf32>
    %129 = arith.mulf %95, %128 : vector<8x64xf32>
    %cst_54 = arith.constant 0.000000e+00 : f32
    %130 = vector.broadcast %cst_54 : f32 to vector<8x64xf32>
    %131 = arith.cmpf oge, %88, %130 : vector<8x64xf32>
    %cst_55 = arith.constant 1.000000e+00 : f32
    %132 = vector.broadcast %cst_55 : f32 to vector<8x64xf32>
    %133 = arith.subf %132, %129 : vector<8x64xf32>
    %cst_56 = arith.constant 1.000000e+00 : f32
    %134 = vector.broadcast %cst_56 : f32 to vector<8x64xf32>
    %135 = arith.subf %129, %134 : vector<8x64xf32>
    %136 = arith.select %131, %133, %135 : vector<8x64xi1>, vector<8x64xf32>
    %cst_57 = arith.constant 1.000000e+00 : f32
    %137 = vector.broadcast %cst_57 : f32 to vector<8x64xf32>
    %138 = arith.addf %137, %136 : vector<8x64xf32>
    %139 = arith.mulf %86, %138 : vector<8x64xf32>
    %c0_58 = arith.constant 0 : index
    %c0_59 = arith.constant 0 : index
    %140 = vector.load %arg12[%c0_58, %c0_59] : memref<64x32xf32, #tpu.memory_space<vmem>>, vector<64x32xf32>
    %cst_60 = arith.constant dense<0.000000e+00> : vector<8x32xf32>
    %141 = tpu.matmul %139, %140, %cst_60 {dimension_numbers = #tpu.dot_dimension_numbers<[1], [0], [0], [1], [0, 0, 1, 1], [], []>} : vector<8x64xf32>, vector<64x32xf32>, vector<8x32xf32> -> vector<8x32xf32>
    %c0_61 = arith.constant 0 : index
    %c0_62 = arith.constant 0 : index
    %142 = vector.load %arg13[%c0_61, %c0_62] : memref<1x32xf32, #tpu.memory_space<vmem>>, vector<1x32xf32>
    %143 = vector.broadcast %142 : vector<1x32xf32> to vector<8x32xf32>
    %144 = arith.addf %141, %143 : vector<8x32xf32>
    %145 = arith.addf %57, %144 : vector<8x32xf32>
    %c0_63 = arith.constant 0 : index
    %c0_64 = arith.constant 0 : index
    %c0_65 = arith.constant 0 : index
    %146 = vector.load %arg14[%c0_63, %c0_64, %c0_65] : memref<1x8x32xf32, #tpu.memory_space<vmem>>, vector<1x8x32xf32>
    %147 = vector.shape_cast %146 : vector<1x8x32xf32> to vector<8x32xf32>
    %148 = vector.shape_cast %145 : vector<8x32xf32> to vector<1x8x32xf32>
    tpu.vector_store %arg14[%c0_63, %c0_64, %c0_65], %148 {strides = array<i32>} : memref<1x8x32xf32, #tpu.memory_space<vmem>>, vector<1x8x32xf32>,
    return
  }
  func.func @transform_0(%arg0: i32) -> (i32, i32, i32) {
    %c0_i32 = arith.constant 0 : i32
    %c0_i32_0 = arith.constant 0 : i32
    %c0_i32_1 = arith.constant 0 : i32
    return %arg0, %c0_i32, %c0_i32_0 : i32, i32, i32
  }
  func.func @transform_1(%arg0: i32) -> (i32, i32) {
    %c0_i32 = arith.constant 0 : i32
    %c0_i32_0 = arith.constant 0 : i32
    %c0_i32_1 = arith.constant 0 : i32
    return %c0_i32, %c0_i32_0 : i32, i32
  }
  func.func @transform_2(%arg0: i32) -> (i32, i32) {
    %c0_i32 = arith.constant 0 : i32
    %c0_i32_0 = arith.constant 0 : i32
    %c0_i32_1 = arith.constant 0 : i32
    return %c0_i32, %c0_i32_0 : i32, i32
  }
  func.func @transform_3(%arg0: i32) -> (i32, i32) {
    %c0_i32 = arith.constant 0 : i32
    %c0_i32_0 = arith.constant 0 : i32
    %c0_i32_1 = arith.constant 0 : i32
    return %c0_i32, %c0_i32_0 : i32, i32
  }
  func.func @transform_4(%arg0: i32) -> (i32, i32) {
    %c0_i32 = arith.constant 0 : i32
    %c0_i32_0 = arith.constant 0 : i32
    %c0_i32_1 = arith.constant 0 : i32
    return %c0_i32, %c0_i32_0 : i32, i32
  }
  func.func @transform_5(%arg0: i32) -> (i32, i32) {
    %c0_i32 = arith.constant 0 : i32
    %c0_i32_0 = arith.constant 0 : i32
    %c0_i32_1 = arith.constant 0 : i32
    return %c0_i32, %c0_i32_0 : i32, i32
  }
  func.func @transform_6(%arg0: i32) -> (i32, i32) {
    %c0_i32 = arith.constant 0 : i32
    %c0_i32_0 = arith.constant 0 : i32
    %c0_i32_1 = arith.constant 0 : i32
    return %c0_i32, %c0_i32_0 : i32, i32
  }
  func.func @transform_7(%arg0: i32) -> (i32, i32) {
    %c0_i32 = arith.constant 0 : i32
    %c0_i32_0 = arith.constant 0 : i32
    %c0_i32_1 = arith.constant 0 : i32
    return %c0_i32, %c0_i32_0 : i32, i32
  }
  func.func @transform_8(%arg0: i32) -> (i32, i32) {
    %c0_i32 = arith.constant 0 : i32
    %c0_i32_0 = arith.constant 0 : i32
    %c0_i32_1 = arith.constant 0 : i32
    return %c0_i32, %c0_i32_0 : i32, i32
  }
  func.func @transform_9(%arg0: i32) -> (i32, i32) {
    %c0_i32 = arith.constant 0 : i32
    %c0_i32_0 = arith.constant 0 : i32
    %c0_i32_1 = arith.constant 0 : i32
    return %c0_i32, %c0_i32_0 : i32, i32
  }
  func.func @transform_10(%arg0: i32) -> (i32, i32) {
    %c0_i32 = arith.constant 0 : i32
    %c0_i32_0 = arith.constant 0 : i32
    %c0_i32_1 = arith.constant 0 : i32
    return %c0_i32, %c0_i32_0 : i32, i32
  }
  func.func @transform_11(%arg0: i32) -> (i32, i32) {
    %c0_i32 = arith.constant 0 : i32
    %c0_i32_0 = arith.constant 0 : i32
    %c0_i32_1 = arith.constant 0 : i32
    return %c0_i32, %c0_i32_0 : i32, i32
  }
  func.func @transform_12(%arg0: i32) -> (i32, i32) {
    %c0_i32 = arith.constant 0 : i32
    %c0_i32_0 = arith.constant 0 : i32
    %c0_i32_1 = arith.constant 0 : i32
    return %c0_i32, %c0_i32_0 : i32, i32
  }
  func.func @transform_13(%arg0: i32) -> (i32, i32, i32) {
    %c0_i32 = arith.constant 0 : i32
    %c0_i32_0 = arith.constant 0 : i32
    %c0_i32_1 = arith.constant 0 : i32
    return %arg0, %c0_i32, %c0_i32_0 : i32, i32, i32
  }
}

</mosaic_0001>

<llo_original>
// kernel: tpu_custom_call.1
$region0: #{tpu_custom_call.1}
  #allocation0 [shape = 'u32[]', space=smem, size = 0x4, offset = 0x4, fixed_abs, tag = 'smem constant byte address 0x4 - core index']
  #allocation1 [shape = 'u32[144,128]{1,0:T(1,128)}', space=vmem, size = 0x12000, scoped, tag = 'internal scratch']
  %s0 = inlined_call_operand.hbm [shape: f32[2,8,32], index: 0, kind: input, shape index: {}]
  %s1 = inlined_call_operand.vmem [shape: f32[1,32], index: 1, kind: input, shape index: {}]
  %s2 = inlined_call_operand.vmem [shape: f32[1,32], index: 2, kind: input, shape index: {}]
  %s3 = inlined_call_operand.vmem [shape: f32[32,96], index: 3, kind: input, shape index: {}]
  %s4 = inlined_call_operand.vmem [shape: f32[1,96], index: 4, kind: input, shape index: {}]
  %s5 = inlined_call_operand.vmem [shape: f32[32,32], index: 5, kind: input, shape index: {}]
  %s6 = inlined_call_operand.vmem [shape: f32[1,32], index: 6, kind: input, shape index: {}]
  %s7 = inlined_call_operand.vmem [shape: f32[1,32], index: 7, kind: input, shape index: {}]
  %s8 = inlined_call_operand.vmem [shape: f32[1,32], index: 8, kind: input, shape index: {}]
  %s9 = inlined_call_operand.vmem [shape: f32[32,64], index: 9, kind: input, shape index: {}]
  %s10 = inlined_call_operand.vmem [shape: f32[1,64], index: 10, kind: input, shape index: {}]
  %s11 = inlined_call_operand.vmem [shape: f32[64,32], index: 11, kind: input, shape index: {}]
  %s12 = inlined_call_operand.vmem [shape: f32[1,32], index: 12, kind: input, shape index: {}]
  %s13 = inlined_call_operand.hbm [shape: f32[2,8,32], index: 13, kind: output, shape index: {}]
  %s14 = sld [smem:[#allocation0]]
  $region89: #{tpu_custom_call.1} parent=0
    _
  %s16 = ssub.s32 1, %s14
  %s17 = scalar_select 0, %s16, %s14
  $region1: #{tpu_custom_call.1} parent=0
    #allocation2 [shape = 'u8[8192]{0}', space=vmem, size = 0x2000, scoped, tag = 'input window, operand 0']
    #allocation3 [shape = 's32[2]{0}', space=sflag, size = 0x8, scoped, tag = 'scoped memory for tpu_custom_call.1']
    #allocation4 [shape = 's32[2]{0}', space=sflag, size = 0x8, scoped, tag = 'scoped memory for tpu_custom_call.1']
    #allocation5 [shape = 'u8[8192]{0}', space=vmem, size = 0x2000, scoped, tag = 'output window, operand 0']
    %18 = vsyncpa [#allocation3], 0
    %s19 = scalar_lea.sflag [#allocation3], 1
    %20 = vsyncpa %s19, 0
    %21 = vsyncpa [#allocation4], 0
    %s22 = scalar_lea.sflag [#allocation4], 1
    %23 = vsyncpa %s22, 0
    loop: start=0, step=1, limit=4
    $region2: #{tpu_custom_call.1} parent=1 // loop_pre_header
      _
    $region3: #{tpu_custom_call.1} parent=1 // loop_header
      %s25 = sphi 0, %s29
      %p26 = scmp.ge.s32.totalorder %s25, 4
      %s35 = sphi 0, %s37
      %s38 = sphi 0, %s35
      %s39 = sphi 0, %s38
      %s55 = sphi 0, %s39
      %s59 = sphi 0, %s59
      %s61 = sphi 0, %s59
      %s62 = sphi 0, %s61
      %s76 = sphi 0, %s62
      %s80 = sphi 0, %s80
      %s82 = sphi 0, %s80
      %s83 = sphi 0, %s82
      %s97 = sphi 0, %s83
      %s101 = sphi 0, %s101
      %s103 = sphi 0, %s101
      %s104 = sphi 0, %s103
      %s118 = sphi 0, %s104
      %s122 = sphi 0, %s122
      %s124 = sphi 0, %s122
      %s125 = sphi 0, %s124
      %s139 = sphi 0, %s125
      %s143 = sphi 0, %s143
      %s145 = sphi 0, %s143
      %s146 = sphi 0, %s145
      %s160 = sphi 0, %s146
      %s164 = sphi 0, %s164
      %s166 = sphi 0, %s164
      %s167 = sphi 0, %s166
      %s181 = sphi 0, %s167
      %s185 = sphi 0, %s185
      %s187 = sphi 0, %s185
      %s188 = sphi 0, %s187
      %s202 = sphi 0, %s188
      %s206 = sphi 0, %s206
      %s208 = sphi 0, %s206
      %s209 = sphi 0, %s208
      %s223 = sphi 0, %s209
      %s227 = sphi 0, %s227
      %s229 = sphi 0, %s227
      %s230 = sphi 0, %s229
      %s244 = sphi 0, %s230
      %s248 = sphi 0, %s248
      %s250 = sphi 0, %s248
      %s251 = sphi 0, %s250
      %s265 = sphi 0, %s251
      %s269 = sphi 0, %s269
      %s271 = sphi 0, %s269
      %s272 = sphi 0, %s271
      %s286 = sphi 0, %s272
      %s290 = sphi 0, %s290
      %s292 = sphi 0, %s290
      %s293 = sphi 0, %s292
      %s307 = sphi 0, %s293
      %s313 = sphi 0, %s315
      %s316 = sphi 0, %s313
      %s317 = sphi 0, %s316
      %s333 = sphi 0, %s317
    $region4: #{tpu_custom_call.1} parent=1 // loop_header_branch
      %28 = sbr.rel (%p26) target = $region8
    $region5: #{tpu_custom_call.1} parent=1 // loop_body
      %s30 = ssub.s32 %s25, 1
      %s31 = ssub.s32 %s25, 2
      %s32 = sadd.s32 %s25, 1
      %s33 = ssub.s32 %s25, %s32
      %p34 = scmp.eq.s32.totalorder %s33, 0
      %s36 = sadd.s32 %s35, 1
      %s37 = scalar_select %p34, %s35, %s36
      %p40 = pneg %p34
      %p41 = scmp.eq.s32.totalorder %s25, 1
      %p42 = por %p40, %p41
      %p43 = scmp.ne.s32.totalorder %s35, %s38
      %p44 = scmp.eq.s32.totalorder %s25, 0
      %p45 = por %p43, %p44
      %p46 = scmp.ne.s32.totalorder %s35, %s38
      %p47 = scmp.eq.s32.totalorder %s30, 1
      %p48 = por %p46, %p47
      %p49 = scmp.ne.s32.totalorder %s38, %s39
      %p50 = scmp.eq.s32.totalorder %s30, 0
      %p51 = por %p49, %p50
      %p52 = scmp.ne.s32.totalorder %s38, %s39
      %p53 = scmp.eq.s32.totalorder %s31, 1
      %p54 = por %p52, %p53
      %p56 = scmp.ne.s32.totalorder %s39, %s55
      %p57 = scmp.eq.s32.totalorder %s31, 0
      %p58 = por %p56, %p57
      %s60 = sadd.s32 %s59, 1
      %p63 = scmp.eq.s32.totalorder %s25, 1
      %p64 = scmp.ne.s32.totalorder %s59, %s61
      %p65 = scmp.eq.s32.totalorder %s25, 0
      %p66 = por %p64, %p65
      %p67 = scmp.ne.s32.totalorder %s59, %s61
      %p68 = scmp.eq.s32.totalorder %s30, 1
      %p69 = por %p67, %p68
      %p70 = scmp.ne.s32.totalorder %s61, %s62
      %p71 = scmp.eq.s32.totalorder %s30, 0
      %p72 = por %p70, %p71
      %p73 = scmp.ne.s32.totalorder %s61, %s62
      %p74 = scmp.eq.s32.totalorder %s31, 1
      %p75 = por %p73, %p74
      %p77 = scmp.ne.s32.totalorder %s62, %s76
      %p78 = scmp.eq.s32.totalorder %s31, 0
      %p79 = por %p77, %p78
      %s81 = sadd.s32 %s80, 1
      %p84 = scmp.eq.s32.totalorder %s25, 1
      %p85 = scmp.ne.s32.totalorder %s80, %s82
      %p86 = scmp.eq.s32.totalorder %s25, 0
      %p87 = por %p85, %p86
      %p88 = scmp.ne.s32.totalorder %s80, %s82
      %p89 = scmp.eq.s32.totalorder %s30, 1
      %p90 = por %p88, %p89
      %p91 = scmp.ne.s32.totalorder %s82, %s83
      %p92 = scmp.eq.s32.totalorder %s30, 0
      %p93 = por %p91, %p92
      %p94 = scmp.ne.s32.totalorder %s82, %s83
      %p95 = scmp.eq.s32.totalorder %s31, 1
      %p96 = por %p94, %p95
      %p98 = scmp.ne.s32.totalorder %s83, %s97
      %p99 = scmp.eq.s32.totalorder %s31, 0
      %p100 = por %p98, %p99
      %s102 = sadd.s32 %s101, 1
      %p105 = scmp.eq.s32.totalorder %s25, 1
      %p106 = scmp.ne.s32.totalorder %s101, %s103
      %p107 = scmp.eq.s32.totalorder %s25, 0
      %p108 = por %p106, %p107
      %p109 = scmp.ne.s32.totalorder %s101, %s103
      %p110 = scmp.eq.s32.totalorder %s30, 1
      %p111 = por %p109, %p110
      %p112 = scmp.ne.s32.totalorder %s103, %s104
      %p113 = scmp.eq.s32.totalorder %s30, 0
      %p114 = por %p112, %p113
      %p115 = scmp.ne.s32.totalorder %s103, %s104
      %p116 = scmp.eq.s32.totalorder %s31, 1
      %p117 = por %p115, %p116
      %p119 = scmp.ne.s32.totalorder %s104, %s118
      %p120 = scmp.eq.s32.totalorder %s31, 0
      %p121 = por %p119, %p120
      %s123 = sadd.s32 %s122, 1
      %p126 = scmp.eq.s32.totalorder %s25, 1
      %p127 = scmp.ne.s32.totalorder %s122, %s124
      %p128 = scmp.eq.s32.totalorder %s25, 0
      %p129 = por %p127, %p128
      %p130 = scmp.ne.s32.totalorder %s122, %s124
      %p131 = scmp.eq.s32.totalorder %s30, 1
      %p132 = por %p130, %p131
      %p133 = scmp.ne.s32.totalorder %s124, %s125
      %p134 = scmp.eq.s32.totalorder %s30, 0
      %p135 = por %p133, %p134
      %p136 = scmp.ne.s32.totalorder %s124, %s125
      %p137 = scmp.eq.s32.totalorder %s31, 1
      %p138 = por %p136, %p137
      %p140 = scmp.ne.s32.totalorder %s125, %s139
      %p141 = scmp.eq.s32.totalorder %s31, 0
      %p142 = por %p140, %p141
      %s144 = sadd.s32 %s143, 1
      %p147 = scmp.eq.s32.totalorder %s25, 1
      %p148 = scmp.ne.s32.totalorder %s143, %s145
      %p149 = scmp.eq.s32.totalorder %s25, 0
      %p150 = por %p148, %p149
      %p151 = scmp.ne.s32.totalorder %s143, %s145
      %p152 = scmp.eq.s32.totalorder %s30, 1
      %p153 = por %p151, %p152
      %p154 = scmp.ne.s32.totalorder %s145, %s146
      %p155 = scmp.eq.s32.totalorder %s30, 0
      %p156 = por %p154, %p155
      %p157 = scmp.ne.s32.totalorder %s145, %s146
      %p158 = scmp.eq.s32.totalorder %s31, 1
      %p159 = por %p157, %p158
      %p161 = scmp.ne.s32.totalorder %s146, %s160
      %p162 = scmp.eq.s32.totalorder %s31, 0
      %p163 = por %p161, %p162
      %s165 = sadd.s32 %s164, 1
      %p168 = scmp.eq.s32.totalorder %s25, 1
      %p169 = scmp.ne.s32.totalorder %s164, %s166
      %p170 = scmp.eq.s32.totalorder %s25, 0
      %p171 = por %p169, %p170
      %p172 = scmp.ne.s32.totalorder %s164, %s166
      %p173 = scmp.eq.s32.totalorder %s30, 1
      %p174 = por %p172, %p173
      %p175 = scmp.ne.s32.totalorder %s166, %s167
      %p176 = scmp.eq.s32.totalorder %s30, 0
      %p177 = por %p175, %p176
      %p178 = scmp.ne.s32.totalorder %s166, %s167
      %p179 = scmp.eq.s32.totalorder %s31, 1
      %p180 = por %p178, %p179
      %p182 = scmp.ne.s32.totalorder %s167, %s181
      %p183 = scmp.eq.s32.totalorder %s31, 0
      %p184 = por %p182, %p183
      %s186 = sadd.s32 %s185, 1
      %p189 = scmp.eq.s32.totalorder %s25, 1
      %p190 = scmp.ne.s32.totalorder %s185, %s187
      %p191 = scmp.eq.s32.totalorder %s25, 0
      %p192 = por %p190, %p191
      %p193 = scmp.ne.s32.totalorder %s185, %s187
      %p194 = scmp.eq.s32.totalorder %s30, 1
      %p195 = por %p193, %p194
      %p196 = scmp.ne.s32.totalorder %s187, %s188
      %p197 = scmp.eq.s32.totalorder %s30, 0
      %p198 = por %p196, %p197
      %p199 = scmp.ne.s32.totalorder %s187, %s188
      %p200 = scmp.eq.s32.totalorder %s31, 1
      %p201 = por %p199, %p200
      %p203 = scmp.ne.s32.totalorder %s188, %s202
      %p204 = scmp.eq.s32.totalorder %s31, 0
      %p205 = por %p203, %p204
      %s207 = sadd.s32 %s206, 1
      %p210 = scmp.eq.s32.totalorder %s25, 1
      %p211 = scmp.ne.s32.totalorder %s206, %s208
      %p212 = scmp.eq.s32.totalorder %s25, 0
      %p213 = por %p211, %p212
      %p214 = scmp.ne.s32.totalorder %s206, %s208
      %p215 = scmp.eq.s32.totalorder %s30, 1
      %p216 = por %p214, %p215
      %p217 = scmp.ne.s32.totalorder %s208, %s209
      %p218 = scmp.eq.s32.totalorder %s30, 0
      %p219 = por %p217, %p218
      %p220 = scmp.ne.s32.totalorder %s208, %s209
      %p221 = scmp.eq.s32.totalorder %s31, 1
      %p222 = por %p220, %p221
      %p224 = scmp.ne.s32.totalorder %s209, %s223
      %p225 = scmp.eq.s32.totalorder %s31, 0
      %p226 = por %p224, %p225
      %s228 = sadd.s32 %s227, 1
      %p231 = scmp.eq.s32.totalorder %s25, 1
      %p232 = scmp.ne.s32.totalorder %s227, %s229
      %p233 = scmp.eq.s32.totalorder %s25, 0
      %p234 = por %p232, %p233
      %p235 = scmp.ne.s32.totalorder %s227, %s229
      %p236 = scmp.eq.s32.totalorder %s30, 1
      %p237 = por %p235, %p236
      %p238 = scmp.ne.s32.totalorder %s229, %s230
      %p239 = scmp.eq.s32.totalorder %s30, 0
      %p240 = por %p238, %p239
      %p241 = scmp.ne.s32.totalorder %s229, %s230
      %p242 = scmp.eq.s32.totalorder %s31, 1
      %p243 = por %p241, %p242
      %p245 = scmp.ne.s32.totalorder %s230, %s244
      %p246 = scmp.eq.s32.totalorder %s31, 0
      %p247 = por %p245, %p246
      %s249 = sadd.s32 %s248, 1
      %p252 = scmp.eq.s32.totalorder %s25, 1
      %p253 = scmp.ne.s32.totalorder %s248, %s250
      %p254 = scmp.eq.s32.totalorder %s25, 0
      %p255 = por %p253, %p254
      %p256 = scmp.ne.s32.totalorder %s248, %s250
      %p257 = scmp.eq.s32.totalorder %s30, 1
      %p258 = por %p256, %p257
      %p259 = scmp.ne.s32.totalorder %s250, %s251
      %p260 = scmp.eq.s32.totalorder %s30, 0
      %p261 = por %p259, %p260
      %p262 = scmp.ne.s32.totalorder %s250, %s251
      %p263 = scmp.eq.s32.totalorder %s31, 1
      %p264 = por %p262, %p263
      %p266 = scmp.ne.s32.totalorder %s251, %s265
      %p267 = scmp.eq.s32.totalorder %s31, 0
      %p268 = por %p266, %p267
      %s270 = sadd.s32 %s269, 1
      %p273 = scmp.eq.s32.totalorder %s25, 1
      %p274 = scmp.ne.s32.totalorder %s269, %s271
      %p275 = scmp.eq.s32.totalorder %s25, 0
      %p276 = por %p274, %p275
      %p277 = scmp.ne.s32.totalorder %s269, %s271
      %p278 = scmp.eq.s32.totalorder %s30, 1
      %p279 = por %p277, %p278
      %p280 = scmp.ne.s32.totalorder %s271, %s272
      %p281 = scmp.eq.s32.totalorder %s30, 0
      %p282 = por %p280, %p281
      %p283 = scmp.ne.s32.totalorder %s271, %s272
      %p284 = scmp.eq.s32.totalorder %s31, 1
      %p285 = por %p283, %p284
      %p287 = scmp.ne.s32.totalorder %s272, %s286
      %p288 = scmp.eq.s32.totalorder %s31, 0
      %p289 = por %p287, %p288
      %s291 = sadd.s32 %s290, 1
      %p294 = scmp.eq.s32.totalorder %s25, 1
      %p295 = scmp.ne.s32.totalorder %s290, %s292
      %p296 = scmp.eq.s32.totalorder %s25, 0
      %p297 = por %p295, %p296
      %p298 = scmp.ne.s32.totalorder %s290, %s292
      %p299 = scmp.eq.s32.totalorder %s30, 1
      %p300 = por %p298, %p299
      %p301 = scmp.ne.s32.totalorder %s292, %s293
      %p302 = scmp.eq.s32.totalorder %s30, 0
      %p303 = por %p301, %p302
      %p304 = scmp.ne.s32.totalorder %s292, %s293
      %p305 = scmp.eq.s32.totalorder %s31, 1
      %p306 = por %p304, %p305
      %p308 = scmp.ne.s32.totalorder %s293, %s307
      %p309 = scmp.eq.s32.totalorder %s31, 0
      %p310 = por %p308, %p309
      %s311 = ssub.s32 %s25, %s32
      %p312 = scmp.eq.s32.totalorder %s311, 0
      %s314 = sadd.s32 %s313, 1
      %s315 = scalar_select %p312, %s313, %s314
      %p318 = pneg %p312
      %p319 = scmp.eq.s32.totalorder %s25, 1
      %p320 = por %p318, %p319
      %p321 = scmp.ne.s32.totalorder %s313, %s316
      %p322 = scmp.eq.s32.totalorder %s25, 0
      %p323 = por %p321, %p322
      %p324 = scmp.ne.s32.totalorder %s313, %s316
      %p325 = scmp.eq.s32.totalorder %s30, 1
      %p326 = por %p324, %p325
      %p327 = scmp.ne.s32.totalorder %s316, %s317
      %p328 = scmp.eq.s32.totalorder %s30, 0
      %p329 = por %p327, %p328
      %p330 = scmp.ne.s32.totalorder %s316, %s317
      %p331 = scmp.eq.s32.totalorder %s31, 1
      %p332 = por %p330, %p331
      %p334 = scmp.ne.s32.totalorder %s317, %s333
      %p335 = scmp.eq.s32.totalorder %s31, 0
      %p336 = por %p334, %p335
      %p337 = scmp.le.s32.totalorder 1, %s25
      %p338 = scmp.lt.s32.totalorder %s25, 3
      %p339 = pnand %p337, %p338
      %p340 = pneg %p339
      // Predicated region
      $region9: #{tpu_custom_call.1} parent=5 // pred_check
        _
      $region10: #{tpu_custom_call.1} parent=5 // pred_check_branch
        %342 = sbr.rel (%p339) target = $region12
      $region11: #{tpu_custom_call.1} parent=5 // pred_region
        %s343 = ssub.s32 %s25, 1
        // Predicated region
        $region13: #{tpu_custom_call.1} parent=11 // pred_check
          %p344 = pneg %p72
        $region14: #{tpu_custom_call.1} parent=11 // pred_check_branch
          %346 = sbr.rel (%p344) target = $region16
        $region15: #{tpu_custom_call.1} parent=11 // pred_region
          _
        $region16: #{tpu_custom_call.1} parent=11 // pred_fallthru
          _
        // Predicated region
        $region17: #{tpu_custom_call.1} parent=11 // pred_check
          %p347 = pneg %p93
        $region18: #{tpu_custom_call.1} parent=11 // pred_check_branch
          %349 = sbr.rel (%p347) target = $region20
        $region19: #{tpu_custom_call.1} parent=11 // pred_region
          _
        $region20: #{tpu_custom_call.1} parent=11 // pred_fallthru
          _
        // Predicated region
        $region21: #{tpu_custom_call.1} parent=11 // pred_check
          %p350 = pneg %p114
        $region22: #{tpu_custom_call.1} parent=11 // pred_check_branch
          %352 = sbr.rel (%p350) target = $region24
        $region23: #{tpu_custom_call.1} parent=11 // pred_region
          _
        $region24: #{tpu_custom_call.1} parent=11 // pred_fallthru
          _
        // Predicated region
        $region25: #{tpu_custom_call.1} parent=11 // pred_check
          %p353 = pneg %p135
        $region26: #{tpu_custom_call.1} parent=11 // pred_check_branch
          %355 = sbr.rel (%p353) target = $region28
        $region27: #{tpu_custom_call.1} parent=11 // pred_region
          _
        $region28: #{tpu_custom_call.1} parent=11 // pred_fallthru
          _
        // Predicated region
        $region29: #{tpu_custom_call.1} parent=11 // pred_check
          %p356 = pneg %p156
        $region30: #{tpu_custom_call.1} parent=11 // pred_check_branch
          %358 = sbr.rel (%p356) target = $region32
        $region31: #{tpu_custom_call.1} parent=11 // pred_region
          _
        $region32: #{tpu_custom_call.1} parent=11 // pred_fallthru
          _
        // Predicated region
        $region33: #{tpu_custom_call.1} parent=11 // pred_check
          %p359 = pneg %p177
        $region34: #{tpu_custom_call.1} parent=11 // pred_check_branch
          %361 = sbr.rel (%p359) target = $region36
        $region35: #{tpu_custom_call.1} parent=11 // pred_region
          _
        $region36: #{tpu_custom_call.1} parent=11 // pred_fallthru
          _
        // Predicated region
        $region37: #{tpu_custom_call.1} parent=11 // pred_check
          %p362 = pneg %p198
        $region38: #{tpu_custom_call.1} parent=11 // pred_check_branch
          %364 = sbr.rel (%p362) target = $region40
        $region39: #{tpu_custom_call.1} parent=11 // pred_region
          _
        $region40: #{tpu_custom_call.1} parent=11 // pred_fallthru
          _
        // Predicated region
        $region41: #{tpu_custom_call.1} parent=11 // pred_check
          %p365 = pneg %p219
        $region42: #{tpu_custom_call.1} parent=11 // pred_check_branch
          %367 = sbr.rel (%p365) target = $region44
        $region43: #{tpu_custom_call.1} parent=11 // pred_region
          _
        $region44: #{tpu_custom_call.1} parent=11 // pred_fallthru
          _
        // Predicated region
        $region45: #{tpu_custom_call.1} parent=11 // pred_check
          %p368 = pneg %p240
        $region46: #{tpu_custom_call.1} parent=11 // pred_check_branch
          %370 = sbr.rel (%p368) target = $region48
        $region47: #{tpu_custom_call.1} parent=11 // pred_region
          _
        $region48: #{tpu_custom_call.1} parent=11 // pred_fallthru
          _
        // Predicated region
        $region49: #{tpu_custom_call.1} parent=11 // pred_check
          %p371 = pneg %p261
        $region50: #{tpu_custom_call.1} parent=11 // pred_check_branch
          %373 = sbr.rel (%p371) target = $region52
        $region51: #{tpu_custom_call.1} parent=11 // pred_region
          _
        $region52: #{tpu_custom_call.1} parent=11 // pred_fallthru
          _
        // Predicated region
        $region53: #{tpu_custom_call.1} parent=11 // pred_check
          %p374 = pneg %p282
        $region54: #{tpu_custom_call.1} parent=11 // pred_check_branch
          %376 = sbr.rel (%p374) target = $region56
        $region55: #{tpu_custom_call.1} parent=11 // pred_region
          _
        $region56: #{tpu_custom_call.1} parent=11 // pred_fallthru
          _
        // Predicated region
        $region57: #{tpu_custom_call.1} parent=11 // pred_check
          %p377 = pneg %p303
        $region58: #{tpu_custom_call.1} parent=11 // pred_check_branch
          %379 = sbr.rel (%p377) target = $region60
        $region59: #{tpu_custom_call.1} parent=11 // pred_region
          _
        $region60: #{tpu_custom_call.1} parent=11 // pred_fallthru
          _
      $region12: #{tpu_custom_call.1} parent=5 // pred_fallthru
        _
      %p380 = scmp.lt.s32.totalorder %s25, 2
      // Predicated region
      $region61: #{tpu_custom_call.1} parent=5 // pred_check
        %p381 = pneg %p380
      $region62: #{tpu_custom_call.1} parent=5 // pred_check_branch
        %383 = sbr.rel (%p381) target = $region64
      $region63: #{tpu_custom_call.1} parent=5 // pred_region
        // Predicated region
        $region65: #{tpu_custom_call.1} parent=63 // pred_check
          %p384 = pneg %p45
        $region66: #{tpu_custom_call.1} parent=63 // pred_check_branch
          %386 = sbr.rel (%p384) target = $region68
        $region67: #{tpu_custom_call.1} parent=63 // pred_region
          %s387 = sand.u32 %s35, 1
          %s388 = scalar_lea.sflag [#allocation3], %s387
          %s389 = sand.u32 %s35, 1
          %s390 = smul.addr %s389, 8
          %s391 = scalar_lea.vmem [#allocation2], %s390
          %s393 = ssub.s32 128, 128
          %394 = vsyncadd %s388, %s393
          %s395 = smul.addr %s25, 128
          %s396 = scalar_lea.hbm %s0, %s395
          %s398 = sshll.u32 %s391, 4
          %s399 = int_to_ptr.vmem [resolvable:$true] %s398
          %401 = dma.hbm_to_vmem [thread:$0]  %s396, 128, %s399, %s388
        $region68: #{tpu_custom_call.1} parent=63 // pred_fallthru
          _
      $region64: #{tpu_custom_call.1} parent=5 // pred_fallthru
        _
      %p402 = scmp.le.s32.totalorder 1, %s25
      %p403 = scmp.lt.s32.totalorder %s25, 3
      %p404 = pnand %p402, %p403
      %p405 = pneg %p404
      // Predicated region
      $region69: #{tpu_custom_call.1} parent=5 // pred_check
        _
      $region70: #{tpu_custom_call.1} parent=5 // pred_check_branch
        %407 = sbr.rel (%p404) target = $region72
      $region71: #{tpu_custom_call.1} parent=5 // pred_region
        %s408 = ssub.s32 %s25, 1
        %s409 = sand.u32 %s38, 1
        %s410 = scalar_lea.sflag [#allocation3], %s409
        %s411 = sand.u32 %s38, 1
        %s412 = smul.addr %s411, 8
        %s413 = scalar_lea.vmem [#allocation2], %s412
        // Predicated region
        $region73: #{tpu_custom_call.1} parent=71 // pred_check
          %p414 = pneg %p51
        $region74: #{tpu_custom_call.1} parent=71 // pred_check_branch
          %416 = sbr.rel (%p414) target = $region76
        $region75: #{tpu_custom_call.1} parent=71 // pred_region
          %417 = dma.done %s410, 128
        $region76: #{tpu_custom_call.1} parent=71 // pred_fallthru
          _
        %s418 = sand.u32 %s38, 1
        %s419 = scalar_lea.sflag [#allocation3], %s418
        %s420 = sand.u32 %s38, 1
        %s421 = smul.addr %s420, 8
        %s422 = scalar_lea.vmem [#allocation2], %s421
        %p423 = pneg %p51
        %p424 = pneg %p48
        %p425 = pneg %p72
        %p426 = pneg %p69
        %p427 = pneg %p93
        %p428 = pneg %p90
        %p429 = pneg %p114
        %p430 = pneg %p111
        %p431 = pneg %p135
        %p432 = pneg %p132
        %p433 = pneg %p156
        %p434 = pneg %p153
        %p435 = pneg %p177
        %p436 = pneg %p174
        %p437 = pneg %p198
        %p438 = pneg %p195
        %p439 = pneg %p219
        %p440 = pneg %p216
        %p441 = pneg %p240
        %p442 = pneg %p237
        %p443 = pneg %p261
        %p444 = pneg %p258
        %p445 = pneg %p282
        %p446 = pneg %p279
        %p447 = pneg %p303
        %p448 = pneg %p300
        %p449 = pneg %p329
        %p450 = pneg %p326
        %s451 = sand.u32 %s316, 1
        %s452 = scalar_lea.sflag [#allocation4], %s451
        %s453 = sand.u32 %s316, 1
        %s454 = smul.addr %s453, 8
        %s455 = scalar_lea.vmem [#allocation5], %s454
        %v456 = vld [vmem:[%s413] sm:$0xff]
        %vm457 = vcmask 261120
        %v458 = vsel %vm457, %v456, 0.0
        %459 = vadd.xlane.f32.xlu0 %v458
        %v460 = vpop.xlane.xlu0 %459
        %v461 = vrcp.pop 32.0
        %v462 = vmul.f32 %v460, %v461
        %v463 = vsub.f32 %v456, %v462
        %v464 = vmul.f32 %v463, %v463
        %v465 = vsel %vm457, %v464, 0.0
        %466 = vadd.xlane.f32.xlu0 %v465
        %v467 = vpop.xlane.xlu0 %466
        %v468 = vmul.f32 %v467, %v461
        %v469 = vadd.f32 %v468, 1e-09
        %v470 = vrsqrt.pop %v469
        %v471 = vmul.f32 %v463, %v470
        %v472 = vld [vmem:[%s1] sm:$0x1]
        %v474 = vlaneseq
        %v475 = vshrl.u32 %v474, 7
        %v476 = vsub.s32 0, %v475
        %v477 = vrot.slane %v472, %v476
        %v479 = vmul.f32 %v471, %v477
        %v480 = vld [vmem:[%s2] sm:$0x1]
        %v482 = vlaneseq
        %v483 = vshrl.u32 %v482, 7
        %v484 = vsub.s32 0, %v483
        %v485 = vrot.slane %v480, %v484
        %v487 = vadd.f32 %v479, %v485
        %v488 = vld [vmem:[%s3] sm:$0xff]
        %v489 = vld [vmem:[%s3 + $0x8] sm:$0xff]
        %v490 = vld [vmem:[%s3 + $0x10] sm:$0xff]
        %v491 = vld [vmem:[%s3 + $0x18] sm:$0xff]
        %v492 = vld [vmem:[%s4] sm:$0x1]
        %v494 = vlaneseq
        %v495 = vshrl.u32 %v494, 7
        %v496 = vsub.s32 0, %v495
        %v497 = vrot.slane %v492, %v496
        %v500 = vsel %vm457, %v487, 0
        %502 = vmatprep.subr.mxu0 0.0
        %503 = vmatpush1.msra.mxu0 0.0
        %504 = vmatprep.subr.mxu0 0.0
        %505 = vmatpush1.msra.mxu0 0.0
        %506 = vmatprep.subr.mxu0 0.0
        %507 = vmatpush1.msra.mxu0 0.0
        %508 = vmatprep.subr.mxu0 0.0
        %509 = vmatpush1.msra.mxu0 0.0
        %510 = vmatprep.subr.mxu0 0.0
        %511 = vmatpush1.msra.mxu0 0.0
        %512 = vmatprep.subr.mxu0 0.0
        %513 = vmatpush1.msra.mxu0 0.0
        %514 = vmatprep.subr.mxu0 0.0
        %515 = vmatpush1.msra.mxu0 0.0
        %516 = vmatprep.subr.mxu0 0.0
        %517 = vmatpush1.msra.mxu0 0.0
        %518 = vmatprep.subr.mxu0 0.0
        %519 = vmatpush1.msra.mxu0 0.0
        %520 = vmatprep.subr.mxu0 0.0
        %521 = vmatpush1.msra.mxu0 0.0
        %522 = vmatprep.subr.mxu0 0.0
        %523 = vmatpush1.msra.mxu0 0.0
        %524 = vmatprep.subr.mxu0 0.0
        %525 = vmatpush1.msra.mxu0 0.0
        %526 = vmatprep.subr.mxu0 0.0
        %527 = vmatpush1.msra.mxu0 %v491
        %528 = vmatprep.subr.mxu0 0.0
        %529 = vmatpush1.msra.mxu0 %v490
        %530 = vmatprep.subr.mxu0 0.0
        %531 = vmatpush1.msra.mxu0 %v489
        %532 = vmatprep.subr.mxu0 0.0
        %533 = vmatpush1.msra.mxu0 %v488
        %534 = vmatprep.subr.mxu0 0.0
        %535 = vmatpush2.msra.mxu0 0.0
        %536 = vmatprep.subr.mxu0 0.0
        %537 = vmatpush2.msra.mxu0 0.0
        %538 = vmatprep.subr.mxu0 0.0
        %539 = vmatpush2.msra.mxu0 0.0
        %540 = vmatprep.subr.mxu0 0.0
        %541 = vmatpush2.msra.mxu0 0.0
        %542 = vmatprep.subr.mxu0 0.0
        %543 = vmatpush2.msra.mxu0 0.0
        %544 = vmatprep.subr.mxu0 0.0
        %545 = vmatpush2.msra.mxu0 0.0
        %546 = vmatprep.subr.mxu0 0.0
        %547 = vmatpush2.msra.mxu0 0.0
        %548 = vmatprep.subr.mxu0 0.0
        %549 = vmatpush2.msra.mxu0 0.0
        %550 = vmatprep.subr.mxu0 0.0
        %551 = vmatpush2.msra.mxu0 0.0
        %552 = vmatprep.subr.mxu0 0.0
        %553 = vmatpush2.msra.mxu0 0.0
        %554 = vmatprep.subr.mxu0 0.0
        %555 = vmatpush2.msra.mxu0 0.0
        %556 = vmatprep.subr.mxu0 0.0
        %557 = vmatpush2.msra.mxu0 0.0
        %558 = vmatprep.subr.mxu0 0.0
        %559 = vmatpush2.msra.mxu0 0.0
        %560 = vmatprep.subr.mxu0 0.0
        %561 = vmatpush2.msra.mxu0 0.0
        %562 = vmatprep.subr.mxu0 0.0
        %563 = vmatpush2.msra.mxu0 0.0
        %564 = vmatprep.subr.mxu0 0.0
        %565 = vmatpush2.msra.mxu0 0.0
        %566 = vmatprep.mubr.f32.mxu0 0.0
        %567 = vmatmul.mubr.f32.gmra.mxu0 %v500
        %v568 = vpop.f32.mrf.mxu0
        %v569 = vadd.f32 %v497, %v568
        %v570 = vpop.f32.mrf.mxu0
        %571 = vdwg.mxu0
        %573 = vrot.lane.b32.xlu0 %v569, 120
        %v574 = vpop.permute.xlu0 %573
        %576 = vrot.lane.b32.xlu0 %v569, 112
        %v577 = vpop.permute.xlu0 %576
        %579 = vrot.lane.b32.xlu0 %v569, 104
        %v580 = vpop.permute.xlu0 %579
        %v582 = vcombine.low %v569, %v577
        %v583 = vcombine.high %v569, %v577
        %v585 = vunpack.c.l.s4 1983009808
        %v586 = vunpack.c.0.s8 %v585
        %v587 = vlaneseq
        %v588 = vshrl.u32 %v587, 7
        %v589 = vsub.s32 %v586, %v588
        %v590 = vrot.slane %v582, %v589
        %v592 = vunpack.c.l.s4 1983009808
        %v593 = vunpack.c.0.s8 %v592
        %v594 = vlaneseq
        %v595 = vshrl.u32 %v594, 7
        %v596 = vsub.s32 %v593, %v595
        %v597 = vrot.slane %v583, %v596
        %v598 = vcombine.low %v574, %v580
        %v599 = vcombine.high %v574, %v580
        %v601 = vunpack.c.l.s4 1983009808
        %v602 = vunpack.c.0.s8 %v601
        %v603 = vlaneseq
        %v604 = vshrl.u32 %v603, 7
        %v605 = vsub.s32 %v602, %v604
        %v606 = vrot.slane %v598, %v605
        %v608 = vunpack.c.l.s4 1983009808
        %v609 = vunpack.c.0.s8 %v608
        %v610 = vlaneseq
        %v611 = vshrl.u32 %v610, 7
        %v612 = vsub.s32 %v609, %v611
        %v613 = vrot.slane %v599, %v612
        %v614 = vcombine.low %v590, %v606
        %v615 = vcombine.high %v590, %v606
        %v617 = vunpack.c.l.s4 1934713408
        %v618 = vunpack.c.0.s8 %v617
        %v619 = vlaneseq
        %v620 = vshrl.u32 %v619, 7
        %v621 = vsub.s32 %v618, %v620
        %v622 = vrot.slane %v614, %v621
        %v624 = vunpack.c.l.s4 1934713408
        %v625 = vunpack.c.0.s8 %v624
        %v626 = vlaneseq
        %v627 = vshrl.u32 %v626, 7
        %v628 = vsub.s32 %v625, %v627
        %v629 = vrot.slane %v615, %v628
        %v630 = vcombine.low %v597, %v613
        %v631 = vcombine.high %v597, %v613
        %v633 = vunpack.c.l.s4 1934713408
        %v634 = vunpack.c.0.s8 %v633
        %v635 = vlaneseq
        %v636 = vshrl.u32 %v635, 7
        %v637 = vsub.s32 %v634, %v636
        %v638 = vrot.slane %v630, %v637
        %v640 = vunpack.c.l.s4 1934713408
        %v641 = vunpack.c.0.s8 %v640
        %v642 = vlaneseq
        %v643 = vshrl.u32 %v642, 7
        %v644 = vsub.s32 %v641, %v643
        %v645 = vrot.slane %v631, %v644
        %v646 = vcombine.high %v622, 0.0
        %v647 = vcombine.high %v629, 0.0
        %v648 = vcombine.high %v638, 0.0
        %v649 = vcombine.high %v645, 0.0
        %v650 = vcombine.low %v622, %v629
        %v652 = vunpack.c.l.s4 1983009808
        %v653 = vunpack.c.0.s8 %v652
        %v654 = vlaneseq
        %v655 = vshrl.u32 %v654, 7
        %v656 = vsub.s32 %v653, %v655
        %v657 = vrot.slane %v650, %v656
        %v658 = vcombine.low %v646, %v647
        %v660 = vunpack.c.l.s4 1983009808
        %v661 = vunpack.c.0.s8 %v660
        %v662 = vlaneseq
        %v663 = vshrl.u32 %v662, 7
        %v664 = vsub.s32 %v661, %v663
        %v665 = vrot.slane %v658, %v664
        %v666 = vcombine.low %v638, %v645
        %v668 = vunpack.c.l.s4 1983009808
        %v669 = vunpack.c.0.s8 %v668
        %v670 = vlaneseq
        %v671 = vshrl.u32 %v670, 7
        %v672 = vsub.s32 %v669, %v671
        %v673 = vrot.slane %v666, %v672
        %v674 = vcombine.low %v648, %v649
        %v676 = vunpack.c.l.s4 1983009808
        %v677 = vunpack.c.0.s8 %v676
        %v678 = vlaneseq
        %v679 = vshrl.u32 %v678, 7
        %v680 = vsub.s32 %v677, %v679
        %v681 = vrot.slane %v674, %v680
        %v682 = vcombine.low %v657, %v665
        %v683 = vcombine.high %v657, %v665
        %v685 = vunpack.c.l.s4 1934713408
        %v686 = vunpack.c.0.s8 %v685
        %v687 = vlaneseq
        %v688 = vshrl.u32 %v687, 7
        %v689 = vsub.s32 %v686, %v688
        %v690 = vrot.slane %v682, %v689
        %v692 = vunpack.c.l.s4 1934713408
        %v693 = vunpack.c.0.s8 %v692
        %v694 = vlaneseq
        %v695 = vshrl.u32 %v694, 7
        %v696 = vsub.s32 %v693, %v695
        %v697 = vrot.slane %v683, %v696
        %v698 = vcombine.low %v673, %v681
        %v699 = vcombine.high %v673, %v681
        %v701 = vunpack.c.l.s4 1934713408
        %v702 = vunpack.c.0.s8 %v701
        %v703 = vlaneseq
        %v704 = vshrl.u32 %v703, 7
        %v705 = vsub.s32 %v702, %v704
        %v706 = vrot.slane %v698, %v705
        %v708 = vunpack.c.l.s4 1934713408
        %v709 = vunpack.c.0.s8 %v708
        %v710 = vlaneseq
        %v711 = vshrl.u32 %v710, 7
        %v712 = vsub.s32 %v709, %v711
        %v713 = vrot.slane %v699, %v712
        %v714 = vcombine.low %v690, %v706
        %v715 = vcombine.high %v690, %v706
        %v716 = vcombine.low %v697, %v713
        %v717 = vcombine.high %v697, %v713
        %718 = vrot.lane.b32.xlu0 %v569, 96
        %v719 = vpop.permute.xlu0 %718
        %720 = vrot.lane.b32.xlu0 %v574, 96
        %v721 = vpop.permute.xlu0 %720
        %722 = vrot.lane.b32.xlu0 %v577, 96
        %v723 = vpop.permute.xlu0 %722
        %724 = vrot.lane.b32.xlu0 %v580, 96
        %v725 = vpop.permute.xlu0 %724
        %v730 = vcombine.low %v719, %v723
        %v731 = vcombine.high %v719, %v723
        %v733 = vunpack.c.l.s4 1983009808
        %v734 = vunpack.c.0.s8 %v733
        %v735 = vlaneseq
        %v736 = vshrl.u32 %v735, 7
        %v737 = vsub.s32 %v734, %v736
        %v738 = vrot.slane %v730, %v737
        %v740 = vunpack.c.l.s4 1983009808
        %v741 = vunpack.c.0.s8 %v740
        %v742 = vlaneseq
        %v743 = vshrl.u32 %v742, 7
        %v744 = vsub.s32 %v741, %v743
        %v745 = vrot.slane %v731, %v744
        %v746 = vcombine.low %v721, %v725
        %v747 = vcombine.high %v721, %v725
        %v749 = vunpack.c.l.s4 1983009808
        %v750 = vunpack.c.0.s8 %v749
        %v751 = vlaneseq
        %v752 = vshrl.u32 %v751, 7
        %v753 = vsub.s32 %v750, %v752
        %v754 = vrot.slane %v746, %v753
        %v756 = vunpack.c.l.s4 1983009808
        %v757 = vunpack.c.0.s8 %v756
        %v758 = vlaneseq
        %v759 = vshrl.u32 %v758, 7
        %v760 = vsub.s32 %v757, %v759
        %v761 = vrot.slane %v747, %v760
        %v762 = vcombine.low %v738, %v754
        %v763 = vcombine.high %v738, %v754
        %v765 = vunpack.c.l.s4 1934713408
        %v766 = vunpack.c.0.s8 %v765
        %v767 = vlaneseq
        %v768 = vshrl.u32 %v767, 7
        %v769 = vsub.s32 %v766, %v768
        %v770 = vrot.slane %v762, %v769
        %v772 = vunpack.c.l.s4 1934713408
        %v773 = vunpack.c.0.s8 %v772
        %v774 = vlaneseq
        %v775 = vshrl.u32 %v774, 7
        %v776 = vsub.s32 %v773, %v775
        %v777 = vrot.slane %v763, %v776
        %v778 = vcombine.low %v745, %v761
        %v779 = vcombine.high %v745, %v761
        %v781 = vunpack.c.l.s4 1934713408
        %v782 = vunpack.c.0.s8 %v781
        %v783 = vlaneseq
        %v784 = vshrl.u32 %v783, 7
        %v785 = vsub.s32 %v782, %v784
        %v786 = vrot.slane %v778, %v785
        %v788 = vunpack.c.l.s4 1934713408
        %v789 = vunpack.c.0.s8 %v788
        %v790 = vlaneseq
        %v791 = vshrl.u32 %v790, 7
        %v792 = vsub.s32 %v789, %v791
        %v793 = vrot.slane %v779, %v792
        %v794 = vcombine.high %v770, 0.0
        %v795 = vcombine.high %v777, 0.0
        %v796 = vcombine.high %v786, 0.0
        %v797 = vcombine.high %v793, 0.0
        %v798 = vcombine.low %v770, %v777
        %v800 = vunpack.c.l.s4 1983009808
        %v801 = vunpack.c.0.s8 %v800
        %v802 = vlaneseq
        %v803 = vshrl.u32 %v802, 7
        %v804 = vsub.s32 %v801, %v803
        %v805 = vrot.slane %v798, %v804
        %v806 = vcombine.low %v794, %v795
        %v808 = vunpack.c.l.s4 1983009808
        %v809 = vunpack.c.0.s8 %v808
        %v810 = vlaneseq
        %v811 = vshrl.u32 %v810, 7
        %v812 = vsub.s32 %v809, %v811
        %v813 = vrot.slane %v806, %v812
        %v814 = vcombine.low %v786, %v793
        %v816 = vunpack.c.l.s4 1983009808
        %v817 = vunpack.c.0.s8 %v816
        %v818 = vlaneseq
        %v819 = vshrl.u32 %v818, 7
        %v820 = vsub.s32 %v817, %v819
        %v821 = vrot.slane %v814, %v820
        %v822 = vcombine.low %v796, %v797
        %v824 = vunpack.c.l.s4 1983009808
        %v825 = vunpack.c.0.s8 %v824
        %v826 = vlaneseq
        %v827 = vshrl.u32 %v826, 7
        %v828 = vsub.s32 %v825, %v827
        %v829 = vrot.slane %v822, %v828
        %v830 = vcombine.low %v805, %v813
        %v831 = vcombine.high %v805, %v813
        %v833 = vunpack.c.l.s4 1934713408
        %v834 = vunpack.c.0.s8 %v833
        %v835 = vlaneseq
        %v836 = vshrl.u32 %v835, 7
        %v837 = vsub.s32 %v834, %v836
        %v838 = vrot.slane %v830, %v837
        %v840 = vunpack.c.l.s4 1934713408
        %v841 = vunpack.c.0.s8 %v840
        %v842 = vlaneseq
        %v843 = vshrl.u32 %v842, 7
        %v844 = vsub.s32 %v841, %v843
        %v845 = vrot.slane %v831, %v844
        %v846 = vcombine.low %v821, %v829
        %v847 = vcombine.high %v821, %v829
        %v849 = vunpack.c.l.s4 1934713408
        %v850 = vunpack.c.0.s8 %v849
        %v851 = vlaneseq
        %v852 = vshrl.u32 %v851, 7
        %v853 = vsub.s32 %v850, %v852
        %v854 = vrot.slane %v846, %v853
        %v856 = vunpack.c.l.s4 1934713408
        %v857 = vunpack.c.0.s8 %v856
        %v858 = vlaneseq
        %v859 = vshrl.u32 %v858, 7
        %v860 = vsub.s32 %v857, %v859
        %v861 = vrot.slane %v847, %v860
        %v862 = vcombine.low %v838, %v854
        %v863 = vcombine.high %v838, %v854
        %v864 = vcombine.low %v845, %v861
        %v865 = vcombine.high %v845, %v861
        %866 = vrot.lane.b32.xlu0 %v569, 64
        %v867 = vpop.permute.xlu0 %866
        %868 = vrot.lane.b32.xlu0 %v574, 64
        %v869 = vpop.permute.xlu0 %868
        %870 = vrot.lane.b32.xlu0 %v577, 64
        %v871 = vpop.permute.xlu0 %870
        %872 = vrot.lane.b32.xlu0 %v580, 64
        %v873 = vpop.permute.xlu0 %872
        %v878 = vcombine.low %v867, %v871
        %v879 = vcombine.high %v867, %v871
        %v881 = vunpack.c.l.s4 1983009808
        %v882 = vunpack.c.0.s8 %v881
        %v883 = vlaneseq
        %v884 = vshrl.u32 %v883, 7
        %v885 = vsub.s32 %v882, %v884
        %v886 = vrot.slane %v878, %v885
        %v888 = vunpack.c.l.s4 1983009808
        %v889 = vunpack.c.0.s8 %v888
        %v890 = vlaneseq
        %v891 = vshrl.u32 %v890, 7
        %v892 = vsub.s32 %v889, %v891
        %v893 = vrot.slane %v879, %v892
        %v894 = vcombine.low %v869, %v873
        %v895 = vcombine.high %v869, %v873
        %v897 = vunpack.c.l.s4 1983009808
        %v898 = vunpack.c.0.s8 %v897
        %v899 = vlaneseq
        %v900 = vshrl.u32 %v899, 7
        %v901 = vsub.s32 %v898, %v900
        %v902 = vrot.slane %v894, %v901
        %v904 = vunpack.c.l.s4 1983009808
        %v905 = vunpack.c.0.s8 %v904
        %v906 = vlaneseq
        %v907 = vshrl.u32 %v906, 7
        %v908 = vsub.s32 %v905, %v907
        %v909 = vrot.slane %v895, %v908
        %v910 = vcombine.low %v886, %v902
        %v911 = vcombine.high %v886, %v902
        %v913 = vunpack.c.l.s4 1934713408
        %v914 = vunpack.c.0.s8 %v913
        %v915 = vlaneseq
        %v916 = vshrl.u32 %v915, 7
        %v917 = vsub.s32 %v914, %v916
        %v918 = vrot.slane %v910, %v917
        %v920 = vunpack.c.l.s4 1934713408
        %v921 = vunpack.c.0.s8 %v920
        %v922 = vlaneseq
        %v923 = vshrl.u32 %v922, 7
        %v924 = vsub.s32 %v921, %v923
        %v925 = vrot.slane %v911, %v924
        %v926 = vcombine.low %v893, %v909
        %v927 = vcombine.high %v893, %v909
        %v929 = vunpack.c.l.s4 1934713408
        %v930 = vunpack.c.0.s8 %v929
        %v931 = vlaneseq
        %v932 = vshrl.u32 %v931, 7
        %v933 = vsub.s32 %v930, %v932
        %v934 = vrot.slane %v926, %v933
        %v936 = vunpack.c.l.s4 1934713408
        %v937 = vunpack.c.0.s8 %v936
        %v938 = vlaneseq
        %v939 = vshrl.u32 %v938, 7
        %v940 = vsub.s32 %v937, %v939
        %v941 = vrot.slane %v927, %v940
        %v942 = vcombine.high %v918, 0.0
        %v943 = vcombine.high %v925, 0.0
        %v944 = vcombine.high %v934, 0.0
        %v945 = vcombine.high %v941, 0.0
        %v946 = vcombine.low %v918, %v925
        %v948 = vunpack.c.l.s4 1983009808
        %v949 = vunpack.c.0.s8 %v948
        %v950 = vlaneseq
        %v951 = vshrl.u32 %v950, 7
        %v952 = vsub.s32 %v949, %v951
        %v953 = vrot.slane %v946, %v952
        %v954 = vcombine.low %v942, %v943
        %v956 = vunpack.c.l.s4 1983009808
        %v957 = vunpack.c.0.s8 %v956
        %v958 = vlaneseq
        %v959 = vshrl.u32 %v958, 7
        %v960 = vsub.s32 %v957, %v959
        %v961 = vrot.slane %v954, %v960
        %v962 = vcombine.low %v934, %v941
        %v964 = vunpack.c.l.s4 1983009808
        %v965 = vunpack.c.0.s8 %v964
        %v966 = vlaneseq
        %v967 = vshrl.u32 %v966, 7
        %v968 = vsub.s32 %v965, %v967
        %v969 = vrot.slane %v962, %v968
        %v970 = vcombine.low %v944, %v945
        %v972 = vunpack.c.l.s4 1983009808
        %v973 = vunpack.c.0.s8 %v972
        %v974 = vlaneseq
        %v975 = vshrl.u32 %v974, 7
        %v976 = vsub.s32 %v973, %v975
        %v977 = vrot.slane %v970, %v976
        %v978 = vcombine.low %v953, %v961
        %v979 = vcombine.high %v953, %v961
        %v981 = vunpack.c.l.s4 1934713408
        %v982 = vunpack.c.0.s8 %v981
        %v983 = vlaneseq
        %v984 = vshrl.u32 %v983, 7
        %v985 = vsub.s32 %v982, %v984
        %v986 = vrot.slane %v978, %v985
        %v988 = vunpack.c.l.s4 1934713408
        %v989 = vunpack.c.0.s8 %v988
        %v990 = vlaneseq
        %v991 = vshrl.u32 %v990, 7
        %v992 = vsub.s32 %v989, %v991
        %v993 = vrot.slane %v979, %v992
        %v994 = vcombine.low %v969, %v977
        %v995 = vcombine.high %v969, %v977
        %v997 = vunpack.c.l.s4 1934713408
        %v998 = vunpack.c.0.s8 %v997
        %v999 = vlaneseq
        %v1000 = vshrl.u32 %v999, 7
        %v1001 = vsub.s32 %v998, %v1000
        %v1002 = vrot.slane %v994, %v1001
        %v1004 = vunpack.c.l.s4 1934713408
        %v1005 = vunpack.c.0.s8 %v1004
        %v1006 = vlaneseq
        %v1007 = vshrl.u32 %v1006, 7
        %v1008 = vsub.s32 %v1005, %v1007
        %v1009 = vrot.slane %v995, %v1008
        %v1010 = vcombine.low %v986, %v1002
        %v1011 = vcombine.high %v986, %v1002
        %v1012 = vcombine.low %v993, %v1009
        %v1013 = vcombine.high %v993, %v1009
        %vm1014 = vcmask 64512
        %v1016 = vsel %vm1014, %v714, 0
        %v1019 = vsel %vm1014, %v862, 0
        %1021 = vmatprep.subr.mxu0 0.0
        %1022 = vmatpush1.xpose.msra.mxu0 0.0
        %1023 = vmatprep.subr.mxu0 0.0
        %1024 = vmatpush1.xpose.msra.mxu0 0.0
        %1025 = vmatprep.subr.mxu0 0.0
        %1026 = vmatpush1.xpose.msra.mxu0 0.0
        %1027 = vmatprep.subr.mxu0 0.0
        %1028 = vmatpush1.xpose.msra.mxu0 0.0
        %1029 = vmatprep.subr.mxu0 0.0
        %1030 = vmatpush1.xpose.msra.mxu0 0.0
        %1031 = vmatprep.subr.mxu0 0.0
        %1032 = vmatpush1.xpose.msra.mxu0 0.0
        %1033 = vmatprep.subr.mxu0 0.0
        %1034 = vmatpush1.xpose.msra.mxu0 0.0
        %1035 = vmatprep.subr.mxu0 0.0
        %1036 = vmatpush1.xpose.msra.mxu0 0.0
        %1037 = vmatprep.subr.mxu0 0.0
        %1038 = vmatpush1.xpose.msra.mxu0 0.0
        %1039 = vmatprep.subr.mxu0 0.0
        %1040 = vmatpush1.xpose.msra.mxu0 0.0
        %1041 = vmatprep.subr.mxu0 0.0
        %1042 = vmatpush1.xpose.msra.mxu0 0.0
        %1043 = vmatprep.subr.mxu0 0.0
        %1044 = vmatpush1.xpose.msra.mxu0 0.0
        %1045 = vmatprep.subr.mxu0 0.0
        %1046 = vmatpush1.xpose.msra.mxu0 0.0
        %1047 = vmatprep.subr.mxu0 0.0
        %1048 = vmatpush1.xpose.msra.mxu0 0.0
        %1049 = vmatprep.subr.mxu0 0.0
        %1050 = vmatpush1.xpose.msra.mxu0 0.0
        %1051 = vmatprep.subr.mxu0 0.0
        %1052 = vmatpush1.xpose.msra.mxu0 %v1019
        %1053 = vmatprep.subr.mxu0 0.0
        %1054 = vmatpush2.xpose.msra.mxu0 0.0
        %1055 = vmatprep.subr.mxu0 0.0
        %1056 = vmatpush2.xpose.msra.mxu0 0.0
        %1057 = vmatprep.subr.mxu0 0.0
        %1058 = vmatpush2.xpose.msra.mxu0 0.0
        %1059 = vmatprep.subr.mxu0 0.0
        %1060 = vmatpush2.xpose.msra.mxu0 0.0
        %1061 = vmatprep.subr.mxu0 0.0
        %1062 = vmatpush2.xpose.msra.mxu0 0.0
        %1063 = vmatprep.subr.mxu0 0.0
        %1064 = vmatpush2.xpose.msra.mxu0 0.0
        %1065 = vmatprep.subr.mxu0 0.0
        %1066 = vmatpush2.xpose.msra.mxu0 0.0
        %1067 = vmatprep.subr.mxu0 0.0
        %1068 = vmatpush2.xpose.msra.mxu0 0.0
        %1069 = vmatprep.subr.mxu0 0.0
        %1070 = vmatpush2.xpose.msra.mxu0 0.0
        %1071 = vmatprep.subr.mxu0 0.0
        %1072 = vmatpush2.xpose.msra.mxu0 0.0
        %1073 = vmatprep.subr.mxu0 0.0
        %1074 = vmatpush2.xpose.msra.mxu0 0.0
        %1075 = vmatprep.subr.mxu0 0.0
        %1076 = vmatpush2.xpose.msra.mxu0 0.0
        %1077 = vmatprep.subr.mxu0 0.0
        %1078 = vmatpush2.xpose.msra.mxu0 0.0
        %1079 = vmatprep.subr.mxu0 0.0
        %1080 = vmatpush2.xpose.msra.mxu0 0.0
        %1081 = vmatprep.subr.mxu0 0.0
        %1082 = vmatpush2.xpose.msra.mxu0 0.0
        %1083 = vmatprep.subr.mxu0 0.0
        %1084 = vmatpush2.xpose.msra.mxu0 0.0
        %1085 = vmatprep.mubr.f32.mxu0 0.0
        %1086 = vmatmul.mubr.f32.gmra.mxu0 %v1016
        %v1087 = vpop.f32.mrf.mxu0
        %v1088 = vadd.f32 0.0, %v1087
        %v1089 = vpop.f32.mrf.mxu0
        %1090 = vdwg.mxu0
        %v1092 = vsel %vm1014, %v715, 0
        %v1095 = vsel %vm1014, %v863, 0
        %1097 = vmatprep.subr.mxu0 0.0
        %1098 = vmatpush1.xpose.msra.mxu0 0.0
        %1099 = vmatprep.subr.mxu0 0.0
        %1100 = vmatpush1.xpose.msra.mxu0 0.0
        %1101 = vmatprep.subr.mxu0 0.0
        %1102 = vmatpush1.xpose.msra.mxu0 0.0
        %1103 = vmatprep.subr.mxu0 0.0
        %1104 = vmatpush1.xpose.msra.mxu0 0.0
        %1105 = vmatprep.subr.mxu0 0.0
        %1106 = vmatpush1.xpose.msra.mxu0 0.0
        %1107 = vmatprep.subr.mxu0 0.0
        %1108 = vmatpush1.xpose.msra.mxu0 0.0
        %1109 = vmatprep.subr.mxu0 0.0
        %1110 = vmatpush1.xpose.msra.mxu0 0.0
        %1111 = vmatprep.subr.mxu0 0.0
        %1112 = vmatpush1.xpose.msra.mxu0 0.0
        %1113 = vmatprep.subr.mxu0 0.0
        %1114 = vmatpush1.xpose.msra.mxu0 0.0
        %1115 = vmatprep.subr.mxu0 0.0
        %1116 = vmatpush1.xpose.msra.mxu0 0.0
        %1117 = vmatprep.subr.mxu0 0.0
        %1118 = vmatpush1.xpose.msra.mxu0 0.0
        %1119 = vmatprep.subr.mxu0 0.0
        %1120 = vmatpush1.xpose.msra.mxu0 0.0
        %1121 = vmatprep.subr.mxu0 0.0
        %1122 = vmatpush1.xpose.msra.mxu0 0.0
        %1123 = vmatprep.subr.mxu0 0.0
        %1124 = vmatpush1.xpose.msra.mxu0 0.0
        %1125 = vmatprep.subr.mxu0 0.0
        %1126 = vmatpush1.xpose.msra.mxu0 0.0
        %1127 = vmatprep.subr.mxu0 0.0
        %1128 = vmatpush1.xpose.msra.mxu0 %v1095
        %1129 = vmatprep.subr.mxu0 0.0
        %1130 = vmatpush2.xpose.msra.mxu0 0.0
        %1131 = vmatprep.subr.mxu0 0.0
        %1132 = vmatpush2.xpose.msra.mxu0 0.0
        %1133 = vmatprep.subr.mxu0 0.0
        %1134 = vmatpush2.xpose.msra.mxu0 0.0
        %1135 = vmatprep.subr.mxu0 0.0
        %1136 = vmatpush2.xpose.msra.mxu0 0.0
        %1137 = vmatprep.subr.mxu0 0.0
        %1138 = vmatpush2.xpose.msra.mxu0 0.0
        %1139 = vmatprep.subr.mxu0 0.0
        %1140 = vmatpush2.xpose.msra.mxu0 0.0
        %1141 = vmatprep.subr.mxu0 0.0
        %1142 = vmatpush2.xpose.msra.mxu0 0.0
        %1143 = vmatprep.subr.mxu0 0.0
        %1144 = vmatpush2.xpose.msra.mxu0 0.0
        %1145 = vmatprep.subr.mxu0 0.0
        %1146 = vmatpush2.xpose.msra.mxu0 0.0
        %1147 = vmatprep.subr.mxu0 0.0
        %1148 = vmatpush2.xpose.msra.mxu0 0.0
        %1149 = vmatprep.subr.mxu0 0.0
        %1150 = vmatpush2.xpose.msra.mxu0 0.0
        %1151 = vmatprep.subr.mxu0 0.0
        %1152 = vmatpush2.xpose.msra.mxu0 0.0
        %1153 = vmatprep.subr.mxu0 0.0
        %1154 = vmatpush2.xpose.msra.mxu0 0.0
        %1155 = vmatprep.subr.mxu0 0.0
        %1156 = vmatpush2.xpose.msra.mxu0 0.0
        %1157 = vmatprep.subr.mxu0 0.0
        %1158 = vmatpush2.xpose.msra.mxu0 0.0
        %1159 = vmatprep.subr.mxu0 0.0
        %1160 = vmatpush2.xpose.msra.mxu0 0.0
        %1161 = vmatprep.mubr.f32.mxu0 0.0
        %1162 = vmatmul.mubr.f32.gmra.mxu0 %v1092
        %v1163 = vpop.f32.mrf.mxu0
        %v1164 = vadd.f32 0.0, %v1163
        %v1165 = vpop.f32.mrf.mxu0
        %1166 = vdwg.mxu0
        %v1168 = vsel %vm1014, %v716, 0
        %v1171 = vsel %vm1014, %v864, 0
        %1173 = vmatprep.subr.mxu0 0.0
        %1174 = vmatpush1.xpose.msra.mxu0 0.0
        %1175 = vmatprep.subr.mxu0 0.0
        %1176 = vmatpush1.xpose.msra.mxu0 0.0
        %1177 = vmatprep.subr.mxu0 0.0
        %1178 = vmatpush1.xpose.msra.mxu0 0.0
        %1179 = vmatprep.subr.mxu0 0.0
        %1180 = vmatpush1.xpose.msra.mxu0 0.0
        %1181 = vmatprep.subr.mxu0 0.0
        %1182 = vmatpush1.xpose.msra.mxu0 0.0
        %1183 = vmatprep.subr.mxu0 0.0
        %1184 = vmatpush1.xpose.msra.mxu0 0.0
        %1185 = vmatprep.subr.mxu0 0.0
        %1186 = vmatpush1.xpose.msra.mxu0 0.0
        %1187 = vmatprep.subr.mxu0 0.0
        %1188 = vmatpush1.xpose.msra.mxu0 0.0
        %1189 = vmatprep.subr.mxu0 0.0
        %1190 = vmatpush1.xpose.msra.mxu0 0.0
        %1191 = vmatprep.subr.mxu0 0.0
        %1192 = vmatpush1.xpose.msra.mxu0 0.0
        %1193 = vmatprep.subr.mxu0 0.0
        %1194 = vmatpush1.xpose.msra.mxu0 0.0
        %1195 = vmatprep.subr.mxu0 0.0
        %1196 = vmatpush1.xpose.msra.mxu0 0.0
        %1197 = vmatprep.subr.mxu0 0.0
        %1198 = vmatpush1.xpose.msra.mxu0 0.0
        %1199 = vmatprep.subr.mxu0 0.0
        %1200 = vmatpush1.xpose.msra.mxu0 0.0
        %1201 = vmatprep.subr.mxu0 0.0
        %1202 = vmatpush1.xpose.msra.mxu0 0.0
        %1203 = vmatprep.subr.mxu0 0.0
        %1204 = vmatpush1.xpose.msra.mxu0 %v1171
        %1205 = vmatprep.subr.mxu0 0.0
        %1206 = vmatpush2.xpose.msra.mxu0 0.0
        %1207 = vmatprep.subr.mxu0 0.0
        %1208 = vmatpush2.xpose.msra.mxu0 0.0
        %1209 = vmatprep.subr.mxu0 0.0
        %1210 = vmatpush2.xpose.msra.mxu0 0.0
        %1211 = vmatprep.subr.mxu0 0.0
        %1212 = vmatpush2.xpose.msra.mxu0 0.0
        %1213 = vmatprep.subr.mxu0 0.0
        %1214 = vmatpush2.xpose.msra.mxu0 0.0
        %1215 = vmatprep.subr.mxu0 0.0
        %1216 = vmatpush2.xpose.msra.mxu0 0.0
        %1217 = vmatprep.subr.mxu0 0.0
        %1218 = vmatpush2.xpose.msra.mxu0 0.0
        %1219 = vmatprep.subr.mxu0 0.0
        %1220 = vmatpush2.xpose.msra.mxu0 0.0
        %1221 = vmatprep.subr.mxu0 0.0
        %1222 = vmatpush2.xpose.msra.mxu0 0.0
        %1223 = vmatprep.subr.mxu0 0.0
        %1224 = vmatpush2.xpose.msra.mxu0 0.0
        %1225 = vmatprep.subr.mxu0 0.0
        %1226 = vmatpush2.xpose.msra.mxu0 0.0
        %1227 = vmatprep.subr.mxu0 0.0
        %1228 = vmatpush2.xpose.msra.mxu0 0.0
        %1229 = vmatprep.subr.mxu0 0.0
        %1230 = vmatpush2.xpose.msra.mxu0 0.0
        %1231 = vmatprep.subr.mxu0 0.0
        %1232 = vmatpush2.xpose.msra.mxu0 0.0
        %1233 = vmatprep.subr.mxu0 0.0
        %1234 = vmatpush2.xpose.msra.mxu0 0.0
        %1235 = vmatprep.subr.mxu0 0.0
        %1236 = vmatpush2.xpose.msra.mxu0 0.0
        %1237 = vmatprep.mubr.f32.mxu0 0.0
        %1238 = vmatmul.mubr.f32.gmra.mxu0 %v1168
        %v1239 = vpop.f32.mrf.mxu0
        %v1240 = vadd.f32 0.0, %v1239
        %v1241 = vpop.f32.mrf.mxu0
        %1242 = vdwg.mxu0
        %v1244 = vsel %vm1014, %v717, 0
        %v1247 = vsel %vm1014, %v865, 0
        %1249 = vmatprep.subr.mxu0 0.0
        %1250 = vmatpush1.xpose.msra.mxu0 0.0
        %1251 = vmatprep.subr.mxu0 0.0
        %1252 = vmatpush1.xpose.msra.mxu0 0.0
        %1253 = vmatprep.subr.mxu0 0.0
        %1254 = vmatpush1.xpose.msra.mxu0 0.0
        %1255 = vmatprep.subr.mxu0 0.0
        %1256 = vmatpush1.xpose.msra.mxu0 0.0
        %1257 = vmatprep.subr.mxu0 0.0
        %1258 = vmatpush1.xpose.msra.mxu0 0.0
        %1259 = vmatprep.subr.mxu0 0.0
        %1260 = vmatpush1.xpose.msra.mxu0 0.0
        %1261 = vmatprep.subr.mxu0 0.0
        %1262 = vmatpush1.xpose.msra.mxu0 0.0
        %1263 = vmatprep.subr.mxu0 0.0
        %1264 = vmatpush1.xpose.msra.mxu0 0.0
        %1265 = vmatprep.subr.mxu0 0.0
        %1266 = vmatpush1.xpose.msra.mxu0 0.0
        %1267 = vmatprep.subr.mxu0 0.0
        %1268 = vmatpush1.xpose.msra.mxu0 0.0
        %1269 = vmatprep.subr.mxu0 0.0
        %1270 = vmatpush1.xpose.msra.mxu0 0.0
        %1271 = vmatprep.subr.mxu0 0.0
        %1272 = vmatpush1.xpose.msra.mxu0 0.0
        %1273 = vmatprep.subr.mxu0 0.0
        %1274 = vmatpush1.xpose.msra.mxu0 0.0
        %1275 = vmatprep.subr.mxu0 0.0
        %1276 = vmatpush1.xpose.msra.mxu0 0.0
        %1277 = vmatprep.subr.mxu0 0.0
        %1278 = vmatpush1.xpose.msra.mxu0 0.0
        %1279 = vmatprep.subr.mxu0 0.0
        %1280 = vmatpush1.xpose.msra.mxu0 %v1247
        %1281 = vmatprep.subr.mxu0 0.0
        %1282 = vmatpush2.xpose.msra.mxu0 0.0
        %1283 = vmatprep.subr.mxu0 0.0
        %1284 = vmatpush2.xpose.msra.mxu0 0.0
        %1285 = vmatprep.subr.mxu0 0.0
        %1286 = vmatpush2.xpose.msra.mxu0 0.0
        %1287 = vmatprep.subr.mxu0 0.0
        %1288 = vmatpush2.xpose.msra.mxu0 0.0
        %1289 = vmatprep.subr.mxu0 0.0
        %1290 = vmatpush2.xpose.msra.mxu0 0.0
        %1291 = vmatprep.subr.mxu0 0.0
        %1292 = vmatpush2.xpose.msra.mxu0 0.0
        %1293 = vmatprep.subr.mxu0 0.0
        %1294 = vmatpush2.xpose.msra.mxu0 0.0
        %1295 = vmatprep.subr.mxu0 0.0
        %1296 = vmatpush2.xpose.msra.mxu0 0.0
        %1297 = vmatprep.subr.mxu0 0.0
        %1298 = vmatpush2.xpose.msra.mxu0 0.0
        %1299 = vmatprep.subr.mxu0 0.0
        %1300 = vmatpush2.xpose.msra.mxu0 0.0
        %1301 = vmatprep.subr.mxu0 0.0
        %1302 = vmatpush2.xpose.msra.mxu0 0.0
        %1303 = vmatprep.subr.mxu0 0.0
        %1304 = vmatpush2.xpose.msra.mxu0 0.0
        %1305 = vmatprep.subr.mxu0 0.0
        %1306 = vmatpush2.xpose.msra.mxu0 0.0
        %1307 = vmatprep.subr.mxu0 0.0
        %1308 = vmatpush2.xpose.msra.mxu0 0.0
        %1309 = vmatprep.subr.mxu0 0.0
        %1310 = vmatpush2.xpose.msra.mxu0 0.0
        %1311 = vmatprep.subr.mxu0 0.0
        %1312 = vmatpush2.xpose.msra.mxu0 0.0
        %1313 = vmatprep.mubr.f32.mxu0 0.0
        %1314 = vmatmul.mubr.f32.gmra.mxu0 %v1244
        %v1315 = vpop.f32.mrf.mxu0
        %v1316 = vadd.f32 0.0, %v1315
        %v1317 = vpop.f32.mrf.mxu0
        %1318 = vdwg.mxu0
        %v1319 = vsel %vm1014, %v1088, -inf
        %1320 = vmax.xlane.f32.xlu0 %v1319
        %v1321 = vpop.xlane.xlu0 %1320
        %v1322 = vsel %vm1014, %v1164, -inf
        %1323 = vmax.xlane.f32.xlu0 %v1322
        %v1324 = vpop.xlane.xlu0 %1323
        %v1325 = vsel %vm1014, %v1240, -inf
        %1326 = vmax.xlane.f32.xlu0 %v1325
        %v1327 = vpop.xlane.xlu0 %1326
        %v1328 = vsel %vm1014, %v1316, -inf
        %1329 = vmax.xlane.f32.xlu0 %v1328
        %v1330 = vpop.xlane.xlu0 %1329
        %v1331 = vsub.f32 %v1088, %v1321
        %v1332 = vsub.f32 %v1164, %v1324
        %v1333 = vsub.f32 %v1240, %v1327
        %v1334 = vsub.f32 %v1316, %v1330
        %v1335 = vmul.f32 %v1331, 1.442695
        %v1336 = vpow.pop %v1335
        %v1337 = vmul.f32 %v1332, 1.442695
        %v1338 = vpow.pop %v1337
        %v1339 = vmul.f32 %v1333, 1.442695
        %v1340 = vpow.pop %v1339
        %v1341 = vmul.f32 %v1334, 1.442695
        %v1342 = vpow.pop %v1341
        %v1343 = vsel %vm1014, %v1336, 0.0
        %1344 = vadd.xlane.f32.xlu0 %v1343
        %v1345 = vpop.xlane.xlu0 %1344
        %v1346 = vsel %vm1014, %v1338, 0.0
        %1347 = vadd.xlane.f32.xlu0 %v1346
        %v1348 = vpop.xlane.xlu0 %1347
        %v1349 = vsel %vm1014, %v1340, 0.0
        %1350 = vadd.xlane.f32.xlu0 %v1349
        %v1351 = vpop.xlane.xlu0 %1350
        %v1352 = vsel %vm1014, %v1342, 0.0
        %1353 = vadd.xlane.f32.xlu0 %v1352
        %v1354 = vpop.xlane.xlu0 %1353
        %v1355 = vrcp.pop %v1345
        %v1356 = vrcp.pop %v1348
        %v1357 = vrcp.pop %v1351
        %v1358 = vrcp.pop %v1354
        %v1359 = vmul.f32 %v1336, %v1355
        %v1360 = vmul.f32 %v1338, %v1356
        %v1361 = vmul.f32 %v1340, %v1357
        %v1362 = vmul.f32 %v1342, %v1358
        %v1364 = vsel %vm1014, %v1359, 0
        %1366 = vmatprep.subr.mxu0 0.0
        %1367 = vmatpush1.msra.mxu0 0.0
        %1368 = vmatprep.subr.mxu0 0.0
        %1369 = vmatpush1.msra.mxu0 0.0
        %1370 = vmatprep.subr.mxu0 0.0
        %1371 = vmatpush1.msra.mxu0 0.0
        %1372 = vmatprep.subr.mxu0 0.0
        %1373 = vmatpush1.msra.mxu0 0.0
        %1374 = vmatprep.subr.mxu0 0.0
        %1375 = vmatpush1.msra.mxu0 0.0
        %1376 = vmatprep.subr.mxu0 0.0
        %1377 = vmatpush1.msra.mxu0 0.0
        %1378 = vmatprep.subr.mxu0 0.0
        %1379 = vmatpush1.msra.mxu0 0.0
        %1380 = vmatprep.subr.mxu0 0.0
        %1381 = vmatpush1.msra.mxu0 0.0
        %1382 = vmatprep.subr.mxu0 0.0
        %1383 = vmatpush1.msra.mxu0 0.0
        %1384 = vmatprep.subr.mxu0 0.0
        %1385 = vmatpush1.msra.mxu0 0.0
        %1386 = vmatprep.subr.mxu0 0.0
        %1387 = vmatpush1.msra.mxu0 0.0
        %1388 = vmatprep.subr.mxu0 0.0
        %1389 = vmatpush1.msra.mxu0 0.0
        %1390 = vmatprep.subr.mxu0 0.0
        %1391 = vmatpush1.msra.mxu0 0.0
        %1392 = vmatprep.subr.mxu0 0.0
        %1393 = vmatpush1.msra.mxu0 0.0
        %1394 = vmatprep.subr.mxu0 0.0
        %1395 = vmatpush1.msra.mxu0 0.0
        %1396 = vmatprep.subr.mxu0 0.0
        %1397 = vmatpush1.msra.mxu0 %v1010
        %1398 = vmatprep.subr.mxu0 0.0
        %1399 = vmatpush2.msra.mxu0 0.0
        %1400 = vmatprep.subr.mxu0 0.0
        %1401 = vmatpush2.msra.mxu0 0.0
        %1402 = vmatprep.subr.mxu0 0.0
        %1403 = vmatpush2.msra.mxu0 0.0
        %1404 = vmatprep.subr.mxu0 0.0
        %1405 = vmatpush2.msra.mxu0 0.0
        %1406 = vmatprep.subr.mxu0 0.0
        %1407 = vmatpush2.msra.mxu0 0.0
        %1408 = vmatprep.subr.mxu0 0.0
        %1409 = vmatpush2.msra.mxu0 0.0
        %1410 = vmatprep.subr.mxu0 0.0
        %1411 = vmatpush2.msra.mxu0 0.0
        %1412 = vmatprep.subr.mxu0 0.0
        %1413 = vmatpush2.msra.mxu0 0.0
        %1414 = vmatprep.subr.mxu0 0.0
        %1415 = vmatpush2.msra.mxu0 0.0
        %1416 = vmatprep.subr.mxu0 0.0
        %1417 = vmatpush2.msra.mxu0 0.0
        %1418 = vmatprep.subr.mxu0 0.0
        %1419 = vmatpush2.msra.mxu0 0.0
        %1420 = vmatprep.subr.mxu0 0.0
        %1421 = vmatpush2.msra.mxu0 0.0
        %1422 = vmatprep.subr.mxu0 0.0
        %1423 = vmatpush2.msra.mxu0 0.0
        %1424 = vmatprep.subr.mxu0 0.0
        %1425 = vmatpush2.msra.mxu0 0.0
        %1426 = vmatprep.subr.mxu0 0.0
        %1427 = vmatpush2.msra.mxu0 0.0
        %1428 = vmatprep.subr.mxu0 0.0
        %1429 = vmatpush2.msra.mxu0 0.0
        %1430 = vmatprep.mubr.f32.mxu0 0.0
        %1431 = vmatmul.mubr.f32.gmra.mxu0 %v1364
        %v1432 = vpop.f32.mrf.mxu0
        %v1433 = vadd.f32 0.0, %v1432
        %v1434 = vpop.f32.mrf.mxu0
        %1435 = vdwg.mxu0
        %v1437 = vsel %vm1014, %v1360, 0
        %1439 = vmatprep.subr.mxu0 0.0
        %1440 = vmatpush1.msra.mxu0 0.0
        %1441 = vmatprep.subr.mxu0 0.0
        %1442 = vmatpush1.msra.mxu0 0.0
        %1443 = vmatprep.subr.mxu0 0.0
        %1444 = vmatpush1.msra.mxu0 0.0
        %1445 = vmatprep.subr.mxu0 0.0
        %1446 = vmatpush1.msra.mxu0 0.0
        %1447 = vmatprep.subr.mxu0 0.0
        %1448 = vmatpush1.msra.mxu0 0.0
        %1449 = vmatprep.subr.mxu0 0.0
        %1450 = vmatpush1.msra.mxu0 0.0
        %1451 = vmatprep.subr.mxu0 0.0
        %1452 = vmatpush1.msra.mxu0 0.0
        %1453 = vmatprep.subr.mxu0 0.0
        %1454 = vmatpush1.msra.mxu0 0.0
        %1455 = vmatprep.subr.mxu0 0.0
        %1456 = vmatpush1.msra.mxu0 0.0
        %1457 = vmatprep.subr.mxu0 0.0
        %1458 = vmatpush1.msra.mxu0 0.0
        %1459 = vmatprep.subr.mxu0 0.0
        %1460 = vmatpush1.msra.mxu0 0.0
        %1461 = vmatprep.subr.mxu0 0.0
        %1462 = vmatpush1.msra.mxu0 0.0
        %1463 = vmatprep.subr.mxu0 0.0
        %1464 = vmatpush1.msra.mxu0 0.0
        %1465 = vmatprep.subr.mxu0 0.0
        %1466 = vmatpush1.msra.mxu0 0.0
        %1467 = vmatprep.subr.mxu0 0.0
        %1468 = vmatpush1.msra.mxu0 0.0
        %1469 = vmatprep.subr.mxu0 0.0
        %1470 = vmatpush1.msra.mxu0 %v1011
        %1471 = vmatprep.subr.mxu0 0.0
        %1472 = vmatpush2.msra.mxu0 0.0
        %1473 = vmatprep.subr.mxu0 0.0
        %1474 = vmatpush2.msra.mxu0 0.0
        %1475 = vmatprep.subr.mxu0 0.0
        %1476 = vmatpush2.msra.mxu0 0.0
        %1477 = vmatprep.subr.mxu0 0.0
        %1478 = vmatpush2.msra.mxu0 0.0
        %1479 = vmatprep.subr.mxu0 0.0
        %1480 = vmatpush2.msra.mxu0 0.0
        %1481 = vmatprep.subr.mxu0 0.0
        %1482 = vmatpush2.msra.mxu0 0.0
        %1483 = vmatprep.subr.mxu0 0.0
        %1484 = vmatpush2.msra.mxu0 0.0
        %1485 = vmatprep.subr.mxu0 0.0
        %1486 = vmatpush2.msra.mxu0 0.0
        %1487 = vmatprep.subr.mxu0 0.0
        %1488 = vmatpush2.msra.mxu0 0.0
        %1489 = vmatprep.subr.mxu0 0.0
        %1490 = vmatpush2.msra.mxu0 0.0
        %1491 = vmatprep.subr.mxu0 0.0
        %1492 = vmatpush2.msra.mxu0 0.0
        %1493 = vmatprep.subr.mxu0 0.0
        %1494 = vmatpush2.msra.mxu0 0.0
        %1495 = vmatprep.subr.mxu0 0.0
        %1496 = vmatpush2.msra.mxu0 0.0
        %1497 = vmatprep.subr.mxu0 0.0
        %1498 = vmatpush2.msra.mxu0 0.0
        %1499 = vmatprep.subr.mxu0 0.0
        %1500 = vmatpush2.msra.mxu0 0.0
        %1501 = vmatprep.subr.mxu0 0.0
        %1502 = vmatpush2.msra.mxu0 0.0
        %1503 = vmatprep.mubr.f32.mxu0 0.0
        %1504 = vmatmul.mubr.f32.gmra.mxu0 %v1437
        %v1505 = vpop.f32.mrf.mxu0
        %v1506 = vadd.f32 0.0, %v1505
        %v1507 = vpop.f32.mrf.mxu0
        %1508 = vdwg.mxu0
        %v1510 = vsel %vm1014, %v1361, 0
        %1512 = vmatprep.subr.mxu0 0.0
        %1513 = vmatpush1.msra.mxu0 0.0
        %1514 = vmatprep.subr.mxu0 0.0
        %1515 = vmatpush1.msra.mxu0 0.0
        %1516 = vmatprep.subr.mxu0 0.0
        %1517 = vmatpush1.msra.mxu0 0.0
        %1518 = vmatprep.subr.mxu0 0.0
        %1519 = vmatpush1.msra.mxu0 0.0
        %1520 = vmatprep.subr.mxu0 0.0
        %1521 = vmatpush1.msra.mxu0 0.0
        %1522 = vmatprep.subr.mxu0 0.0
        %1523 = vmatpush1.msra.mxu0 0.0
        %1524 = vmatprep.subr.mxu0 0.0
        %1525 = vmatpush1.msra.mxu0 0.0
        %1526 = vmatprep.subr.mxu0 0.0
        %1527 = vmatpush1.msra.mxu0 0.0
        %1528 = vmatprep.subr.mxu0 0.0
        %1529 = vmatpush1.msra.mxu0 0.0
        %1530 = vmatprep.subr.mxu0 0.0
        %1531 = vmatpush1.msra.mxu0 0.0
        %1532 = vmatprep.subr.mxu0 0.0
        %1533 = vmatpush1.msra.mxu0 0.0
        %1534 = vmatprep.subr.mxu0 0.0
        %1535 = vmatpush1.msra.mxu0 0.0
        %1536 = vmatprep.subr.mxu0 0.0
        %1537 = vmatpush1.msra.mxu0 0.0
        %1538 = vmatprep.subr.mxu0 0.0
        %1539 = vmatpush1.msra.mxu0 0.0
        %1540 = vmatprep.subr.mxu0 0.0
        %1541 = vmatpush1.msra.mxu0 0.0
        %1542 = vmatprep.subr.mxu0 0.0
        %1543 = vmatpush1.msra.mxu0 %v1012
        %1544 = vmatprep.subr.mxu0 0.0
        %1545 = vmatpush2.msra.mxu0 0.0
        %1546 = vmatprep.subr.mxu0 0.0
        %1547 = vmatpush2.msra.mxu0 0.0
        %1548 = vmatprep.subr.mxu0 0.0
        %1549 = vmatpush2.msra.mxu0 0.0
        %1550 = vmatprep.subr.mxu0 0.0
        %1551 = vmatpush2.msra.mxu0 0.0
        %1552 = vmatprep.subr.mxu0 0.0
        %1553 = vmatpush2.msra.mxu0 0.0
        %1554 = vmatprep.subr.mxu0 0.0
        %1555 = vmatpush2.msra.mxu0 0.0
        %1556 = vmatprep.subr.mxu0 0.0
        %1557 = vmatpush2.msra.mxu0 0.0
        %1558 = vmatprep.subr.mxu0 0.0
        %1559 = vmatpush2.msra.mxu0 0.0
        %1560 = vmatprep.subr.mxu0 0.0
        %1561 = vmatpush2.msra.mxu0 0.0
        %1562 = vmatprep.subr.mxu0 0.0
        %1563 = vmatpush2.msra.mxu0 0.0
        %1564 = vmatprep.subr.mxu0 0.0
        %1565 = vmatpush2.msra.mxu0 0.0
        %1566 = vmatprep.subr.mxu0 0.0
        %1567 = vmatpush2.msra.mxu0 0.0
        %1568 = vmatprep.subr.mxu0 0.0
        %1569 = vmatpush2.msra.mxu0 0.0
        %1570 = vmatprep.subr.mxu0 0.0
        %1571 = vmatpush2.msra.mxu0 0.0
        %1572 = vmatprep.subr.mxu0 0.0
        %1573 = vmatpush2.msra.mxu0 0.0
        %1574 = vmatprep.subr.mxu0 0.0
        %1575 = vmatpush2.msra.mxu0 0.0
        %1576 = vmatprep.mubr.f32.mxu0 0.0
        %1577 = vmatmul.mubr.f32.gmra.mxu0 %v1510
        %v1578 = vpop.f32.mrf.mxu0
        %v1579 = vadd.f32 0.0, %v1578
        %v1580 = vpop.f32.mrf.mxu0
        %1581 = vdwg.mxu0
        %v1583 = vsel %vm1014, %v1362, 0
        %1585 = vmatprep.subr.mxu0 0.0
        %1586 = vmatpush1.msra.mxu0 0.0
        %1587 = vmatprep.subr.mxu0 0.0
        %1588 = vmatpush1.msra.mxu0 0.0
        %1589 = vmatprep.subr.mxu0 0.0
        %1590 = vmatpush1.msra.mxu0 0.0
        %1591 = vmatprep.subr.mxu0 0.0
        %1592 = vmatpush1.msra.mxu0 0.0
        %1593 = vmatprep.subr.mxu0 0.0
        %1594 = vmatpush1.msra.mxu0 0.0
        %1595 = vmatprep.subr.mxu0 0.0
        %1596 = vmatpush1.msra.mxu0 0.0
        %1597 = vmatprep.subr.mxu0 0.0
        %1598 = vmatpush1.msra.mxu0 0.0
        %1599 = vmatprep.subr.mxu0 0.0
        %1600 = vmatpush1.msra.mxu0 0.0
        %1601 = vmatprep.subr.mxu0 0.0
        %1602 = vmatpush1.msra.mxu0 0.0
        %1603 = vmatprep.subr.mxu0 0.0
        %1604 = vmatpush1.msra.mxu0 0.0
        %1605 = vmatprep.subr.mxu0 0.0
        %1606 = vmatpush1.msra.mxu0 0.0
        %1607 = vmatprep.subr.mxu0 0.0
        %1608 = vmatpush1.msra.mxu0 0.0
        %1609 = vmatprep.subr.mxu0 0.0
        %1610 = vmatpush1.msra.mxu0 0.0
        %1611 = vmatprep.subr.mxu0 0.0
        %1612 = vmatpush1.msra.mxu0 0.0
        %1613 = vmatprep.subr.mxu0 0.0
        %1614 = vmatpush1.msra.mxu0 0.0
        %1615 = vmatprep.subr.mxu0 0.0
        %1616 = vmatpush1.msra.mxu0 %v1013
        %1617 = vmatprep.subr.mxu0 0.0
        %1618 = vmatpush2.msra.mxu0 0.0
        %1619 = vmatprep.subr.mxu0 0.0
        %1620 = vmatpush2.msra.mxu0 0.0
        %1621 = vmatprep.subr.mxu0 0.0
        %1622 = vmatpush2.msra.mxu0 0.0
        %1623 = vmatprep.subr.mxu0 0.0
        %1624 = vmatpush2.msra.mxu0 0.0
        %1625 = vmatprep.subr.mxu0 0.0
        %1626 = vmatpush2.msra.mxu0 0.0
        %1627 = vmatprep.subr.mxu0 0.0
        %1628 = vmatpush2.msra.mxu0 0.0
        %1629 = vmatprep.subr.mxu0 0.0
        %1630 = vmatpush2.msra.mxu0 0.0
        %1631 = vmatprep.subr.mxu0 0.0
        %1632 = vmatpush2.msra.mxu0 0.0
        %1633 = vmatprep.subr.mxu0 0.0
        %1634 = vmatpush2.msra.mxu0 0.0
        %1635 = vmatprep.subr.mxu0 0.0
        %1636 = vmatpush2.msra.mxu0 0.0
        %1637 = vmatprep.subr.mxu0 0.0
        %1638 = vmatpush2.msra.mxu0 0.0
        %1639 = vmatprep.subr.mxu0 0.0
        %1640 = vmatpush2.msra.mxu0 0.0
        %1641 = vmatprep.subr.mxu0 0.0
        %1642 = vmatpush2.msra.mxu0 0.0
        %1643 = vmatprep.subr.mxu0 0.0
        %1644 = vmatpush2.msra.mxu0 0.0
        %1645 = vmatprep.subr.mxu0 0.0
        %1646 = vmatpush2.msra.mxu0 0.0
        %1647 = vmatprep.subr.mxu0 0.0
        %1648 = vmatpush2.msra.mxu0 0.0
        %1649 = vmatprep.mubr.f32.mxu0 0.0
        %1650 = vmatmul.mubr.f32.gmra.mxu0 %v1583
        %v1651 = vpop.f32.mrf.mxu0
        %v1652 = vadd.f32 0.0, %v1651
        %v1653 = vpop.f32.mrf.mxu0
        %1654 = vdwg.mxu0
        %v1655 = vcombine.low %v1433, %v1579
        %v1656 = vcombine.high %v1433, %v1579
        %v1658 = vunpack.c.l.s4 1983009808
        %v1659 = vunpack.c.0.s8 %v1658
        %v1660 = vlaneseq
        %v1661 = vshrl.u32 %v1660, 7
        %v1662 = vsub.s32 %v1659, %v1661
        %v1663 = vrot.slane %v1655, %v1662
        %v1665 = vunpack.c.l.s4 1983009808
        %v1666 = vunpack.c.0.s8 %v1665
        %v1667 = vlaneseq
        %v1668 = vshrl.u32 %v1667, 7
        %v1669 = vsub.s32 %v1666, %v1668
        %v1670 = vrot.slane %v1656, %v1669
        %v1671 = vcombine.low %v1506, %v1652
        %v1672 = vcombine.high %v1506, %v1652
        %v1674 = vunpack.c.l.s4 1983009808
        %v1675 = vunpack.c.0.s8 %v1674
        %v1676 = vlaneseq
        %v1677 = vshrl.u32 %v1676, 7
        %v1678 = vsub.s32 %v1675, %v1677
        %v1679 = vrot.slane %v1671, %v1678
        %v1681 = vunpack.c.l.s4 1983009808
        %v1682 = vunpack.c.0.s8 %v1681
        %v1683 = vlaneseq
        %v1684 = vshrl.u32 %v1683, 7
        %v1685 = vsub.s32 %v1682, %v1684
        %v1686 = vrot.slane %v1672, %v1685
        %v1687 = vcombine.low %v1663, %v1679
        %v1688 = vcombine.high %v1663, %v1679
        %v1690 = vunpack.c.l.s4 1934713408
        %v1691 = vunpack.c.0.s8 %v1690
        %v1692 = vlaneseq
        %v1693 = vshrl.u32 %v1692, 7
        %v1694 = vsub.s32 %v1691, %v1693
        %v1695 = vrot.slane %v1687, %v1694
        %v1697 = vunpack.c.l.s4 1934713408
        %v1698 = vunpack.c.0.s8 %v1697
        %v1699 = vlaneseq
        %v1700 = vshrl.u32 %v1699, 7
        %v1701 = vsub.s32 %v1698, %v1700
        %v1702 = vrot.slane %v1688, %v1701
        %v1703 = vcombine.low %v1670, %v1686
        %v1704 = vcombine.high %v1670, %v1686
        %v1706 = vunpack.c.l.s4 1934713408
        %v1707 = vunpack.c.0.s8 %v1706
        %v1708 = vlaneseq
        %v1709 = vshrl.u32 %v1708, 7
        %v1710 = vsub.s32 %v1707, %v1709
        %v1711 = vrot.slane %v1703, %v1710
        %v1713 = vunpack.c.l.s4 1934713408
        %v1714 = vunpack.c.0.s8 %v1713
        %v1715 = vlaneseq
        %v1716 = vshrl.u32 %v1715, 7
        %v1717 = vsub.s32 %v1714, %v1716
        %v1718 = vrot.slane %v1704, %v1717
        %v1719 = vcombine.high %v1695, 0.0
        %v1720 = vcombine.high %v1702, 0.0
        %v1721 = vcombine.high %v1711, 0.0
        %v1722 = vcombine.high %v1718, 0.0
        %v1723 = vcombine.low %v1695, %v1702
        %v1725 = vunpack.c.l.s4 1983009808
        %v1726 = vunpack.c.0.s8 %v1725
        %v1727 = vlaneseq
        %v1728 = vshrl.u32 %v1727, 7
        %v1729 = vsub.s32 %v1726, %v1728
        %v1730 = vrot.slane %v1723, %v1729
        %v1731 = vcombine.low %v1719, %v1720
        %v1733 = vunpack.c.l.s4 1983009808
        %v1734 = vunpack.c.0.s8 %v1733
        %v1735 = vlaneseq
        %v1736 = vshrl.u32 %v1735, 7
        %v1737 = vsub.s32 %v1734, %v1736
        %v1738 = vrot.slane %v1731, %v1737
        %v1739 = vcombine.low %v1711, %v1718
        %v1741 = vunpack.c.l.s4 1983009808
        %v1742 = vunpack.c.0.s8 %v1741
        %v1743 = vlaneseq
        %v1744 = vshrl.u32 %v1743, 7
        %v1745 = vsub.s32 %v1742, %v1744
        %v1746 = vrot.slane %v1739, %v1745
        %v1747 = vcombine.low %v1721, %v1722
        %v1749 = vunpack.c.l.s4 1983009808
        %v1750 = vunpack.c.0.s8 %v1749
        %v1751 = vlaneseq
        %v1752 = vshrl.u32 %v1751, 7
        %v1753 = vsub.s32 %v1750, %v1752
        %v1754 = vrot.slane %v1747, %v1753
        %v1755 = vcombine.low %v1730, %v1738
        %v1756 = vcombine.high %v1730, %v1738
        %v1758 = vunpack.c.l.s4 1934713408
        %v1759 = vunpack.c.0.s8 %v1758
        %v1760 = vlaneseq
        %v1761 = vshrl.u32 %v1760, 7
        %v1762 = vsub.s32 %v1759, %v1761
        %v1763 = vrot.slane %v1755, %v1762
        %v1765 = vunpack.c.l.s4 1934713408
        %v1766 = vunpack.c.0.s8 %v1765
        %v1767 = vlaneseq
        %v1768 = vshrl.u32 %v1767, 7
        %v1769 = vsub.s32 %v1766, %v1768
        %v1770 = vrot.slane %v1756, %v1769
        %v1771 = vcombine.low %v1746, %v1754
        %v1772 = vcombine.high %v1746, %v1754
        %v1774 = vunpack.c.l.s4 1934713408
        %v1775 = vunpack.c.0.s8 %v1774
        %v1776 = vlaneseq
        %v1777 = vshrl.u32 %v1776, 7
        %v1778 = vsub.s32 %v1775, %v1777
        %v1779 = vrot.slane %v1771, %v1778
        %v1781 = vunpack.c.l.s4 1934713408
        %v1782 = vunpack.c.0.s8 %v1781
        %v1783 = vlaneseq
        %v1784 = vshrl.u32 %v1783, 7
        %v1785 = vsub.s32 %v1782, %v1784
        %v1786 = vrot.slane %v1772, %v1785
        %v1787 = vcombine.low %v1763, %v1779
        %v1788 = vcombine.high %v1763, %v1779
        %v1789 = vcombine.low %v1770, %v1786
        %v1790 = vcombine.high %v1770, %v1786
        %1792 = vrot.lane.b32.xlu0 %v1788, 8
        %v1793 = vpop.permute.xlu0 %1792
        %1796 = vrot.lane.b32.xlu0 %v1789, 16
        %v1797 = vpop.permute.xlu0 %1796
        %1800 = vrot.lane.b32.xlu0 %v1790, 24
        %v1801 = vpop.permute.xlu0 %1800
        %v1803 = vsel %vm1014, %v1787, %v1793
        %vm1804 = vcmask 130048
        %v1805 = vsel %vm1804, %v1803, %v1797
        %vm1806 = vcmask 195584
        %v1807 = vsel %vm1806, %v1805, %v1801
        %v1808 = vld [vmem:[%s5] sm:$0xff]
        %v1809 = vld [vmem:[%s5 + $0x8] sm:$0xff]
        %v1810 = vld [vmem:[%s5 + $0x10] sm:$0xff]
        %v1811 = vld [vmem:[%s5 + $0x18] sm:$0xff]
        %v1812 = vld [vmem:[%s6] sm:$0x1]
        %v1814 = vlaneseq
        %v1815 = vshrl.u32 %v1814, 7
        %v1816 = vsub.s32 0, %v1815
        %v1817 = vrot.slane %v1812, %v1816
        %v1820 = vsel %vm457, %v1807, 0
        %1822 = vmatprep.subr.mxu0 0.0
        %1823 = vmatpush1.msra.mxu0 0.0
        %1824 = vmatprep.subr.mxu0 0.0
        %1825 = vmatpush1.msra.mxu0 0.0
        %1826 = vmatprep.subr.mxu0 0.0
        %1827 = vmatpush1.msra.mxu0 0.0
        %1828 = vmatprep.subr.mxu0 0.0
        %1829 = vmatpush1.msra.mxu0 0.0
        %1830 = vmatprep.subr.mxu0 0.0
        %1831 = vmatpush1.msra.mxu0 0.0
        %1832 = vmatprep.subr.mxu0 0.0
        %1833 = vmatpush1.msra.mxu0 0.0
        %1834 = vmatprep.subr.mxu0 0.0
        %1835 = vmatpush1.msra.mxu0 0.0
        %1836 = vmatprep.subr.mxu0 0.0
        %1837 = vmatpush1.msra.mxu0 0.0
        %1838 = vmatprep.subr.mxu0 0.0
        %1839 = vmatpush1.msra.mxu0 0.0
        %1840 = vmatprep.subr.mxu0 0.0
        %1841 = vmatpush1.msra.mxu0 0.0
        %1842 = vmatprep.subr.mxu0 0.0
        %1843 = vmatpush1.msra.mxu0 0.0
        %1844 = vmatprep.subr.mxu0 0.0
        %1845 = vmatpush1.msra.mxu0 0.0
        %1846 = vmatprep.subr.mxu0 0.0
        %1847 = vmatpush1.msra.mxu0 %v1811
        %1848 = vmatprep.subr.mxu0 0.0
        %1849 = vmatpush1.msra.mxu0 %v1810
        %1850 = vmatprep.subr.mxu0 0.0
        %1851 = vmatpush1.msra.mxu0 %v1809
        %1852 = vmatprep.subr.mxu0 0.0
        %1853 = vmatpush1.msra.mxu0 %v1808
        %1854 = vmatprep.subr.mxu0 0.0
        %1855 = vmatpush2.msra.mxu0 0.0
        %1856 = vmatprep.subr.mxu0 0.0
        %1857 = vmatpush2.msra.mxu0 0.0
        %1858 = vmatprep.subr.mxu0 0.0
        %1859 = vmatpush2.msra.mxu0 0.0
        %1860 = vmatprep.subr.mxu0 0.0
        %1861 = vmatpush2.msra.mxu0 0.0
        %1862 = vmatprep.subr.mxu0 0.0
        %1863 = vmatpush2.msra.mxu0 0.0
        %1864 = vmatprep.subr.mxu0 0.0
        %1865 = vmatpush2.msra.mxu0 0.0
        %1866 = vmatprep.subr.mxu0 0.0
        %1867 = vmatpush2.msra.mxu0 0.0
        %1868 = vmatprep.subr.mxu0 0.0
        %1869 = vmatpush2.msra.mxu0 0.0
        %1870 = vmatprep.subr.mxu0 0.0
        %1871 = vmatpush2.msra.mxu0 0.0
        %1872 = vmatprep.subr.mxu0 0.0
        %1873 = vmatpush2.msra.mxu0 0.0
        %1874 = vmatprep.subr.mxu0 0.0
        %1875 = vmatpush2.msra.mxu0 0.0
        %1876 = vmatprep.subr.mxu0 0.0
        %1877 = vmatpush2.msra.mxu0 0.0
        %1878 = vmatprep.subr.mxu0 0.0
        %1879 = vmatpush2.msra.mxu0 0.0
        %1880 = vmatprep.subr.mxu0 0.0
        %1881 = vmatpush2.msra.mxu0 0.0
        %1882 = vmatprep.subr.mxu0 0.0
        %1883 = vmatpush2.msra.mxu0 0.0
        %1884 = vmatprep.subr.mxu0 0.0
        %1885 = vmatpush2.msra.mxu0 0.0
        %1886 = vmatprep.mubr.f32.mxu0 0.0
        %1887 = vmatmul.mubr.f32.gmra.mxu0 %v1820
        %v1888 = vpop.f32.mrf.mxu0
        %v1889 = vadd.f32 %v1817, %v1888
        %v1890 = vpop.f32.mrf.mxu0
        %1891 = vdwg.mxu0
        %v1892 = vadd.f32 %v456, %v1889
        %v1893 = vsel %vm457, %v1892, 0.0
        %1894 = vadd.xlane.f32.xlu0 %v1893
        %v1895 = vpop.xlane.xlu0 %1894
        %v1896 = vmul.f32 %v1895, %v461
        %v1897 = vsub.f32 %v1892, %v1896
        %v1898 = vmul.f32 %v1897, %v1897
        %v1899 = vsel %vm457, %v1898, 0.0
        %1900 = vadd.xlane.f32.xlu0 %v1899
        %v1901 = vpop.xlane.xlu0 %1900
        %v1902 = vmul.f32 %v1901, %v461
        %v1903 = vadd.f32 %v1902, 1e-09
        %v1904 = vrsqrt.pop %v1903
        %v1905 = vmul.f32 %v1897, %v1904
        %v1906 = vld [vmem:[%s7] sm:$0x1]
        %v1908 = vlaneseq
        %v1909 = vshrl.u32 %v1908, 7
        %v1910 = vsub.s32 0, %v1909
        %v1911 = vrot.slane %v1906, %v1910
        %v1913 = vmul.f32 %v1905, %v1911
        %v1914 = vld [vmem:[%s8] sm:$0x1]
        %v1916 = vlaneseq
        %v1917 = vshrl.u32 %v1916, 7
        %v1918 = vsub.s32 0, %v1917
        %v1919 = vrot.slane %v1914, %v1918
        %v1921 = vadd.f32 %v1913, %v1919
        %v1922 = vld [vmem:[%s9] sm:$0xff]
        %v1923 = vld [vmem:[%s9 + $0x8] sm:$0xff]
        %v1924 = vld [vmem:[%s9 + $0x10] sm:$0xff]
        %v1925 = vld [vmem:[%s9 + $0x18] sm:$0xff]
        %v1926 = vld [vmem:[%s10] sm:$0x1]
        %v1928 = vlaneseq
        %v1929 = vshrl.u32 %v1928, 7
        %v1930 = vsub.s32 0, %v1929
        %v1931 = vrot.slane %v1926, %v1930
        %v1934 = vsel %vm457, %v1921, 0
        %1936 = vmatprep.subr.mxu0 0.0
        %1937 = vmatpush1.msra.mxu0 0.0
        %1938 = vmatprep.subr.mxu0 0.0
        %1939 = vmatpush1.msra.mxu0 0.0
        %1940 = vmatprep.subr.mxu0 0.0
        %1941 = vmatpush1.msra.mxu0 0.0
        %1942 = vmatprep.subr.mxu0 0.0
        %1943 = vmatpush1.msra.mxu0 0.0
        %1944 = vmatprep.subr.mxu0 0.0
        %1945 = vmatpush1.msra.mxu0 0.0
        %1946 = vmatprep.subr.mxu0 0.0
        %1947 = vmatpush1.msra.mxu0 0.0
        %1948 = vmatprep.subr.mxu0 0.0
        %1949 = vmatpush1.msra.mxu0 0.0
        %1950 = vmatprep.subr.mxu0 0.0
        %1951 = vmatpush1.msra.mxu0 0.0
        %1952 = vmatprep.subr.mxu0 0.0
        %1953 = vmatpush1.msra.mxu0 0.0
        %1954 = vmatprep.subr.mxu0 0.0
        %1955 = vmatpush1.msra.mxu0 0.0
        %1956 = vmatprep.subr.mxu0 0.0
        %1957 = vmatpush1.msra.mxu0 0.0
        %1958 = vmatprep.subr.mxu0 0.0
        %1959 = vmatpush1.msra.mxu0 0.0
        %1960 = vmatprep.subr.mxu0 0.0
        %1961 = vmatpush1.msra.mxu0 %v1925
        %1962 = vmatprep.subr.mxu0 0.0
        %1963 = vmatpush1.msra.mxu0 %v1924
        %1964 = vmatprep.subr.mxu0 0.0
        %1965 = vmatpush1.msra.mxu0 %v1923
        %1966 = vmatprep.subr.mxu0 0.0
        %1967 = vmatpush1.msra.mxu0 %v1922
        %1968 = vmatprep.subr.mxu0 0.0
        %1969 = vmatpush2.msra.mxu0 0.0
        %1970 = vmatprep.subr.mxu0 0.0
        %1971 = vmatpush2.msra.mxu0 0.0
        %1972 = vmatprep.subr.mxu0 0.0
        %1973 = vmatpush2.msra.mxu0 0.0
        %1974 = vmatprep.subr.mxu0 0.0
        %1975 = vmatpush2.msra.mxu0 0.0
        %1976 = vmatprep.subr.mxu0 0.0
        %1977 = vmatpush2.msra.mxu0 0.0
        %1978 = vmatprep.subr.mxu0 0.0
        %1979 = vmatpush2.msra.mxu0 0.0
        %1980 = vmatprep.subr.mxu0 0.0
        %1981 = vmatpush2.msra.mxu0 0.0
        %1982 = vmatprep.subr.mxu0 0.0
        %1983 = vmatpush2.msra.mxu0 0.0
        %1984 = vmatprep.subr.mxu0 0.0
        %1985 = vmatpush2.msra.mxu0 0.0
        %1986 = vmatprep.subr.mxu0 0.0
        %1987 = vmatpush2.msra.mxu0 0.0
        %1988 = vmatprep.subr.mxu0 0.0
        %1989 = vmatpush2.msra.mxu0 0.0
        %1990 = vmatprep.subr.mxu0 0.0
        %1991 = vmatpush2.msra.mxu0 0.0
        %1992 = vmatprep.subr.mxu0 0.0
        %1993 = vmatpush2.msra.mxu0 0.0
        %1994 = vmatprep.subr.mxu0 0.0
        %1995 = vmatpush2.msra.mxu0 0.0
        %1996 = vmatprep.subr.mxu0 0.0
        %1997 = vmatpush2.msra.mxu0 0.0
        %1998 = vmatprep.subr.mxu0 0.0
        %1999 = vmatpush2.msra.mxu0 0.0
        %2000 = vmatprep.mubr.f32.mxu0 0.0
        %2001 = vmatmul.mubr.f32.gmra.mxu0 %v1934
        %v2002 = vpop.f32.mrf.mxu0
        %v2003 = vadd.f32 %v1931, %v2002
        %v2004 = vpop.f32.mrf.mxu0
        %2005 = vdwg.mxu0
        %v2006 = vmul.f32 %v2003, 0.5
        %v2007 = vmul.f32 %v2003, 0.70710677
        %v2008 = vand.u32 2147483647, %v2007
        %v2009 = vmul.f32 %v2008, 0.5
        %v2010 = vadd.f32 %v2009, 1.0
        %v2011 = vrcp.pop %v2010
        %v2012 = vmul.f32 1.0, %v2011
        %v2013 = vmul.f32 %v2012, 0.17087276
        %v2014 = vadd.f32 %v2013, -0.82215226
        %v2015 = vmul.f32 %v2012, %v2014
        %v2016 = vadd.f32 %v2015, 1.4885159
        %v2017 = vmul.f32 %v2012, %v2016
        %v2018 = vadd.f32 %v2017, -1.135204
        %v2019 = vmul.f32 %v2012, %v2018
        %v2020 = vadd.f32 %v2019, 0.27886808
        %v2021 = vmul.f32 %v2012, %v2020
        %v2022 = vadd.f32 %v2021, -0.18628806
        %v2023 = vmul.f32 %v2012, %v2022
        %v2024 = vadd.f32 %v2023, 0.09678418
        %v2025 = vmul.f32 %v2012, %v2024
        %v2026 = vadd.f32 %v2025, 0.37409195
        %v2027 = vmul.f32 %v2012, %v2026
        %v2028 = vadd.f32 %v2027, 1.0000237
        %v2029 = vmul.f32 %v2012, %v2028
        %v2030 = vadd.f32 %v2029, -1.2655122
        %v2031 = vsub.f32 0.0, %v2008
        %v2032 = vmul.f32 %v2031, %v2008
        %v2033 = vadd.f32 %v2032, %v2030
        %v2034 = vmul.f32 %v2033, 1.442695
        %v2035 = vpow.pop %v2034
        %v2036 = vmul.f32 %v2012, %v2035
        %vm2037 = vcmp.ge.f32.partialorder %v2007, 0.0
        %v2038 = vsub.f32 1.0, %v2036
        %v2039 = vsub.f32 %v2036, 1.0
        %v2040 = vsel %vm2037, %v2038, %v2039
        %v2041 = vadd.f32 %v2040, 1.0
        %v2042 = vmul.f32 %v2006, %v2041
        %v2043 = vld [vmem:[%s11] sm:$0xff]
        %v2044 = vld [vmem:[%s11 + $0x8] sm:$0xff]
        %v2045 = vld [vmem:[%s11 + $0x10] sm:$0xff]
        %v2046 = vld [vmem:[%s11 + $0x18] sm:$0xff]
        %v2047 = vld [vmem:[%s11 + $0x20] sm:$0xff]
        %v2048 = vld [vmem:[%s11 + $0x28] sm:$0xff]
        %v2049 = vld [vmem:[%s11 + $0x30] sm:$0xff]
        %v2050 = vld [vmem:[%s11 + $0x38] sm:$0xff]
        %v2051 = vld [vmem:[%s12] sm:$0x1]
        %v2053 = vlaneseq
        %v2054 = vshrl.u32 %v2053, 7
        %v2055 = vsub.s32 0, %v2054
        %v2056 = vrot.slane %v2051, %v2055
        %vm2058 = vcmask 523264
        %v2060 = vsel %vm2058, %v2042, 0
        %2062 = vmatprep.subr.mxu0 0.0
        %2063 = vmatpush1.msra.mxu0 0.0
        %2064 = vmatprep.subr.mxu0 0.0
        %2065 = vmatpush1.msra.mxu0 0.0
        %2066 = vmatprep.subr.mxu0 0.0
        %2067 = vmatpush1.msra.mxu0 0.0
        %2068 = vmatprep.subr.mxu0 0.0
        %2069 = vmatpush1.msra.mxu0 0.0
        %2070 = vmatprep.subr.mxu0 0.0
        %2071 = vmatpush1.msra.mxu0 0.0
        %2072 = vmatprep.subr.mxu0 0.0
        %2073 = vmatpush1.msra.mxu0 0.0
        %2074 = vmatprep.subr.mxu0 0.0
        %2075 = vmatpush1.msra.mxu0 0.0
        %2076 = vmatprep.subr.mxu0 0.0
        %2077 = vmatpush1.msra.mxu0 0.0
        %2078 = vmatprep.subr.mxu0 0.0
        %2079 = vmatpush1.msra.mxu0 %v2050
        %2080 = vmatprep.subr.mxu0 0.0
        %2081 = vmatpush1.msra.mxu0 %v2049
        %2082 = vmatprep.subr.mxu0 0.0
        %2083 = vmatpush1.msra.mxu0 %v2048
        %2084 = vmatprep.subr.mxu0 0.0
        %2085 = vmatpush1.msra.mxu0 %v2047
        %2086 = vmatprep.subr.mxu0 0.0
        %2087 = vmatpush1.msra.mxu0 %v2046
        %2088 = vmatprep.subr.mxu0 0.0
        %2089 = vmatpush1.msra.mxu0 %v2045
        %2090 = vmatprep.subr.mxu0 0.0
        %2091 = vmatpush1.msra.mxu0 %v2044
        %2092 = vmatprep.subr.mxu0 0.0
        %2093 = vmatpush1.msra.mxu0 %v2043
        %2094 = vmatprep.subr.mxu0 0.0
        %2095 = vmatpush2.msra.mxu0 0.0
        %2096 = vmatprep.subr.mxu0 0.0
        %2097 = vmatpush2.msra.mxu0 0.0
        %2098 = vmatprep.subr.mxu0 0.0
        %2099 = vmatpush2.msra.mxu0 0.0
        %2100 = vmatprep.subr.mxu0 0.0
        %2101 = vmatpush2.msra.mxu0 0.0
        %2102 = vmatprep.subr.mxu0 0.0
        %2103 = vmatpush2.msra.mxu0 0.0
        %2104 = vmatprep.subr.mxu0 0.0
        %2105 = vmatpush2.msra.mxu0 0.0
        %2106 = vmatprep.subr.mxu0 0.0
        %2107 = vmatpush2.msra.mxu0 0.0
        %2108 = vmatprep.subr.mxu0 0.0
        %2109 = vmatpush2.msra.mxu0 0.0
        %2110 = vmatprep.subr.mxu0 0.0
        %2111 = vmatpush2.msra.mxu0 0.0
        %2112 = vmatprep.subr.mxu0 0.0
        %2113 = vmatpush2.msra.mxu0 0.0
        %2114 = vmatprep.subr.mxu0 0.0
        %2115 = vmatpush2.msra.mxu0 0.0
        %2116 = vmatprep.subr.mxu0 0.0
        %2117 = vmatpush2.msra.mxu0 0.0
        %2118 = vmatprep.subr.mxu0 0.0
        %2119 = vmatpush2.msra.mxu0 0.0
        %2120 = vmatprep.subr.mxu0 0.0
        %2121 = vmatpush2.msra.mxu0 0.0
        %2122 = vmatprep.subr.mxu0 0.0
        %2123 = vmatpush2.msra.mxu0 0.0
        %2124 = vmatprep.subr.mxu0 0.0
        %2125 = vmatpush2.msra.mxu0 0.0
        %2126 = vmatprep.mubr.f32.mxu0 0.0
        %2127 = vmatmul.mubr.f32.gmra.mxu0 %v2060
        %v2128 = vpop.f32.mrf.mxu0
        %v2129 = vadd.f32 %v2056, %v2128
        %v2130 = vpop.f32.mrf.mxu0
        %2131 = vdwg.mxu0
        %v2132 = vadd.f32 %v1892, %v2129
        %2133 = vst.msk [vmem:[%s455] sm:$0xff] %vm457, %v2132
        %s2134 = sand.u32 %s316, 1
        %s2135 = scalar_lea.sflag [#allocation4], %s2134
        %s2136 = sand.u32 %s316, 1
        %s2137 = smul.addr %s2136, 8
        %s2138 = scalar_lea.vmem [#allocation5], %s2137
        // Predicated region
        $region77: #{tpu_custom_call.1} parent=71 // pred_check
          %p2139 = pneg %p326
        $region78: #{tpu_custom_call.1} parent=71 // pred_check_branch
          %2141 = sbr.rel (%p2139) target = $region80
        $region79: #{tpu_custom_call.1} parent=71 // pred_region
          %s2143 = ssub.s32 128, 128
          %2144 = vsyncadd %s2135, %s2143
          %s2145 = smul.addr %s30, 128
          %s2146 = scalar_lea.hbm %s13, %s2145
          %s2148 = sshll.u32 %s2138, 4
          %s2149 = int_to_ptr.vmem [resolvable:$true] %s2148
          %2151 = dma.vmem_to_hbm [thread:$0]  %s2149, 128, %s2146, %s2135
        $region80: #{tpu_custom_call.1} parent=71 // pred_fallthru
          _
      $region72: #{tpu_custom_call.1} parent=5 // pred_fallthru
        _
      %p2152 = scmp.le.s32.totalorder 2, %s25
      // Predicated region
      $region81: #{tpu_custom_call.1} parent=5 // pred_check
        %p2153 = pneg %p2152
      $region82: #{tpu_custom_call.1} parent=5 // pred_check_branch
        %2155 = sbr.rel (%p2153) target = $region84
      $region83: #{tpu_custom_call.1} parent=5 // pred_region
        %s2156 = ssub.s32 %s25, 2
        // Predicated region
        $region85: #{tpu_custom_call.1} parent=83 // pred_check
          %p2157 = pneg %p332
        $region86: #{tpu_custom_call.1} parent=83 // pred_check_branch
          %2159 = sbr.rel (%p2157) target = $region88
        $region87: #{tpu_custom_call.1} parent=83 // pred_region
          %s2160 = sand.u32 %s317, 1
          %s2161 = scalar_lea.sflag [#allocation4], %s2160
          %s2162 = sand.u32 %s317, 1
          %s2163 = smul.addr %s2162, 8
          %s2164 = scalar_lea.vmem [#allocation5], %s2163
          %2165 = dma.done %s2161, 128
        $region88: #{tpu_custom_call.1} parent=83 // pred_fallthru
          _
      $region84: #{tpu_custom_call.1} parent=5 // pred_fallthru
        _
    $region6: #{tpu_custom_call.1} parent=1 // loop_footer
      %s29 = sadd.s32 1, %s25
    $region7: #{tpu_custom_call.1} parent=1 // loop_footer_branch
      %24 = sbr.rel target = $region3
    $region8: #{tpu_custom_call.1} parent=1 // loop_exit
      _
    %2166 = vsyncpa [#allocation3], 1
    %s2167 = scalar_lea.sflag [#allocation3], 1
    %2168 = vsyncpa %s2167, 1
    %2169 = vsyncpa [#allocation4], 1
    %s2170 = scalar_lea.sflag [#allocation4], 1
    %2171 = vsyncpa %s2170, 1

</llo_original>
